<compile_context>
chip_gen: v7x
topology: tpu7x:2x2x1
jax: 0.10.0
libtpu: 0.0.40
codegen_flags: <defaults>
</compile_context>

<pallas_src>
import functools

import jax
import jax.numpy as jnp
from jax.experimental import pallas as pl
from jax.experimental.pallas import tpu as pltpu

NUM_MOVE_ACTIONS = 2
HIDDEN = 128
NUM_LAYERS = 6          # 5 hidden (ReLU) + 1 output linear
NUM_HIDDEN_MM = 4       # 128x128 hidden layers per network (layers 1..4)
MAX_BATCH_TILE = 1024   # rows per grid step; live VMEM stays a few MiB even on v7x


def _round_up(x, m):
    return ((x + m - 1) // m) * m


# --------------------------------- kernel ---------------------------------

def _agent_kernel(label_type, tb,
                  x_ref, w0_ref, b0_ref, w_hid_ref, b_hid_ref,
                  w_last_ref, b_last_ref, out_ref, hs_ref):
    f32 = jnp.float32
    dt = x_ref.dtype       # compute dtype (bf16 or f32); accumulation is always f32
    nm = NUM_MOVE_ACTIONS
    H = HIDDEN

    # ---- layer 0: ONE matmul over the fused input [p1_s0 | p1_s1 | p1_s2 | p2]
    # producing [move | switch-slot2 | switch-slot3] activations in one (TB,384).
    h0 = jnp.dot(x_ref[...], w0_ref[...], preferred_element_type=f32)
    h0 = jnp.maximum(h0 + b0_ref[...], 0.0)                     # (TB, 3*128) f32

    h_m = h0[:, 0:H].astype(dt)                                 # (TB, 128)
    # Stack the two switch slots along rows via the natural layer-0 writeback
    # into a VMEM scratch (no extra concat copy of already-materialized arrays).
    hs_ref[0:tb, :] = h0[:, H:2 * H].astype(dt)
    hs_ref[tb:2 * tb, :] = h0[:, 2 * H:3 * H].astype(dt)
    h_s = hs_ref[...]                                           # (2*TB, 128)

    # ---- hidden layers 1..4 (weight slab: [0:4] = move, [4:8] = switch) -------
    for l in range(NUM_HIDDEN_MM):
        h_m = jnp.maximum(
            jnp.dot(h_m, w_hid_ref[l], preferred_element_type=f32)
            + b_hid_ref[l], 0.0).astype(dt)
    for l in range(NUM_HIDDEN_MM):
        h_s = jnp.maximum(
            jnp.dot(h_s, w_hid_ref[NUM_HIDDEN_MM + l], preferred_element_type=f32)
            + b_hid_ref[NUM_HIDDEN_MM + l], 0.0).astype(dt)

    # ---- final layer: two small matmuls against the fused (128,3) last weight
    # (cols 0:2 = move head, col 2 = switch head); no (3*TB,128) concat.
    b_last = b_last_ref[...]                                    # (1, 3) f32
    lm = jnp.dot(h_m, w_last_ref[...], preferred_element_type=f32)   # (TB, 3)
    ls = jnp.dot(h_s, w_last_ref[...], preferred_element_type=f32)   # (2*TB, 3)

    move = lm[:, 0:nm] + b_last[:, 0:nm]                        # (TB, 2)
    s2 = ls[0:tb, nm:nm + 1] + b_last[:, nm:nm + 1]             # (TB, 1)
    s3 = ls[tb:2 * tb, nm:nm + 1] + b_last[:, nm:nm + 1]        # (TB, 1)

    # ---- output assembly: direct column-slice writes --------------------------
    out_ref[:, 0:nm] = move
    out_ref[:, nm:2 * nm] = jnp.zeros_like(move)
    if label_type == 0:
        out_ref[:, 2 * nm:2 * nm + 1] = jnp.maximum(s2, s3)
    else:
        out_ref[:, 2 * nm:2 * nm + 1] = s2
        out_ref[:, 2 * nm + 1:2 * nm + 2] = s3


# -------------------------- one-time parameter packing --------------------------

def prepare_params(move_params, switch_params, p1_pokemon_size, *,
                   compute_dtype=jnp.bfloat16):
    """Pack the 24 Linear params into 6 slabs. Call ONCE (hoisted out of the
    per-call path). Biases stay f32; matmul operands use `compute_dtype`."""
    P1 = p1_pokemon_size
    mw, mb = move_params
    sw, sb = switch_params

    w0m, w0s = mw[0], sw[0]                           # (P1 + P2, 128) each
    zero_p1 = jnp.zeros((P1, HIDDEN), jnp.float32)
    # Block-structured layer-0 weight over the fused input [p1_s0|p1_s1|p1_s2|p2]:
    #   cols   0:128 -> move net (p1 slot 0 + p2)
    #   cols 128:256 -> switch net applied to p1 slot 1 (+ p2)
    #   cols 256:384 -> switch net applied to p1 slot 2 (+ p2)
    col_m = jnp.concatenate([w0m[:P1], zero_p1, zero_p1, w0m[P1:]], axis=0)
    col_s2 = jnp.concatenate([zero_p1, w0s[:P1], zero_p1, w0s[P1:]], axis=0)
    col_s3 = jnp.concatenate([zero_p1, zero_p1, w0s[:P1], w0s[P1:]], axis=0)
    w0_all = jnp.concatenate([col_m, col_s2, col_s3],
                             axis=1).astype(compute_dtype)       # (3*P1+P2, 384)
    b0_all = jnp.concatenate([mb[0], sb[0], sb[0]], axis=1)      # (1, 384) f32

    w_hid = jnp.stack(list(mw[1:5]) + list(sw[1:5]),
                      axis=0).astype(compute_dtype)              # (8, 128, 128)
    b_hid = jnp.stack(list(mb[1:5]) + list(sb[1:5]), axis=0)     # (8, 1, 128) f32
    w_last = jnp.concatenate([mw[5], sw[5]],
                             axis=1).astype(compute_dtype)       # (128, 3)
    b_last = jnp.concatenate([mb[5], sb[5]], axis=1)             # (1, 3) f32
    return (w0_all, b0_all, w_hid, b_hid, w_last, b_last)


# --------------------------------- forward ---------------------------------

@functools.partial(jax.jit, static_argnames=("label_type",))
def switch_equivariant_agent(p1, p2, packed_params, *, label_type=0):
    """p1: (B, >=3, P1); p2: (B, ...) flattened from dim 1.
    packed_params: output of prepare_params()."""
    w0_all, b0_all, w_hid, b_hid, w_last, b_last = packed_params
    dt = w0_all.dtype
    B, n_slots, P1 = p1.shape
    assert n_slots >= 3
    p2f = p2.reshape(B, -1)
    P2 = p2f.shape[1]
    K = 3 * P1 + P2
    assert w0_all.shape[0] == K

    # Single fused activation input; the concat + dtype cast (+ optional pad)
    # fuse into one cheap XLA op and halve the kernel's input HBM bytes for bf16.
    x_full = jnp.concatenate([p1[:, :3, :].reshape(B, 3 * P1), p2f],
                             axis=1).astype(dt)                  # (B, K)

    # ---- batch tiling: aim for >= 2 grid steps so "parallel" splits the batch
    # across TensorCores / megacore parts; cap the tile so VMEM stays small.
    TB = min(MAX_BATCH_TILE, max(8, _round_up(-(-B // 2), 8)))
    n_tiles = -(-B // TB)
    Bp = n_tiles * TB
    if Bp != B:
        x_full = jnp.pad(x_full, ((0, Bp - B), (0, 0)))

    out_dim = 5 if label_type == 0 else 6

    def resident(shape):  # weight slabs: constant index map => stay VMEM-resident
        return pl.BlockSpec(shape, lambda i, _n=len(shape): (0,) * _n)

    in_specs = [
        pl.BlockSpec((TB, K), lambda i: (i, 0)),              # fused input
        resident((K, 3 * HIDDEN)),                            # w0_all
        resident((1, 3 * HIDDEN)),                            # b0_all
        resident((2 * NUM_HIDDEN_MM, HIDDEN, HIDDEN)),        # w_hid
        resident((2 * NUM_HIDDEN_MM, 1, HIDDEN)),             # b_hid
        resident((HIDDEN, NUM_MOVE_ACTIONS + 1)),             # w_last
        resident((1, NUM_MOVE_ACTIONS + 1)),                  # b_last
    ]
    out_specs = pl.BlockSpec((TB, out_dim), lambda i: (i, 0))

    out = pl.pallas_call(
        functools.partial(_agent_kernel, label_type, TB),
        out_shape=jax.ShapeDtypeStruct((Bp, out_dim), jnp.float32),
        grid=(n_tiles,),
        in_specs=in_specs,
        out_specs=out_specs,
        scratch_shapes=[pltpu.VMEM((2 * TB, HIDDEN), dt)],    # stacked switch slots
        compiler_params=pltpu.CompilerParams(
            dimension_semantics=("parallel",),
            vmem_limit_bytes=32 * 1024 * 1024),
    )(x_full, w0_all, b0_all, w_hid, b_hid, w_last, b_last)
    return out[:B]


# ------------------------------- init & reference -------------------------------

def _init_linear(key, din, dout):
    kw, kb = jax.random.split(key)
    w = jax.random.normal(kw, (din, dout), jnp.float32) * (1.0 / jnp.sqrt(din))
    b = jax.random.normal(kb, (1, dout), jnp.float32) * 0.01
    return w, b


def _init_mlp(key, din, dout_final):
    dims = [din] + [HIDDEN] * (NUM_LAYERS - 1) + [dout_final]
    keys = jax.random.split(key, NUM_LAYERS)
    ws, bs = [], []
    for i in range(NUM_LAYERS):
        w, b = _init_linear(keys[i], dims[i], dims[i + 1])
        ws.append(w)
        bs.append(b)
    return ws, bs


def _ref_forward(p1, p2, move_params, switch_params, label_type=0,
                 compute_dtype=jnp.float32):
    """Pure-JAX reference mirroring the PyTorch forward (optionally with the same
    bf16-operand / f32-accumulation casting the kernel uses)."""
    B = p1.shape[0]
    p2f = p2.reshape(B, -1)

    def linear(x, w, b):
        return jnp.dot(x.astype(compute_dtype), w.astype(compute_dtype),
                       preferred_element_type=jnp.float32) + b

    def mlp(x, ws, bs):
        h = x
        for i in range(NUM_LAYERS - 1):
            h = jnp.maximum(linear(h, ws[i], bs[i]), 0.0)
        return linear(h, ws[-1], bs[-1])

    mw, mb = move_params
    sw, sb = switch_params
    move = mlp(jnp.concatenate([p1[:, 0, :], p2f], axis=1), mw, mb)
    move = jnp.concatenate([move, jnp.zeros_like(move)], axis=1)
    s2 = mlp(jnp.concatenate([p1[:, 1, :], p2f], axis=1), sw, sb)
    s3 = mlp(jnp.concatenate([p1[:, 2, :], p2f], axis=1), sw, sb)
    if label_type == 0:
        return jnp.concatenate([move, jnp.maximum(s2, s3)], axis=1)
    return jnp.concatenate([move, s2, s3], axis=1)


if __name__ == "__main__":
    P1_POKEMON_SIZE = 32
    P2_INNER = (2, 24)                      # flattened -> p2_size = 48
    P2_SIZE = P2_INNER[0] * P2_INNER[1]
    DIN = P1_POKEMON_SIZE + P2_SIZE         # 80

    root = jax.random.PRNGKey(0)
    k_p1, k_p2, k_move, k_switch = jax.random.split(root, 4)

    move_params = _init_mlp(k_move, DIN, NUM_MOVE_ACTIONS)
    switch_params = _init_mlp(k_switch, DIN, 1)

    # One-time parameter packing (hoisted out of the per-call forward).
    packed_f32 = prepare_params(move_params, switch_params, P1_POKEMON_SIZE,
                                compute_dtype=jnp.float32)
    packed_bf16 = prepare_params(move_params, switch_params, P1_POKEMON_SIZE)  # bf16 default

    def make_inputs(batch):
        kp1, kp2 = jax.random.split(jax.random.fold_in(root, batch))
        p1 = jax.random.normal(kp1, (batch, 3, P1_POKEMON_SIZE), jnp.float32)
        p2 = jax.random.normal(kp2, (batch,) + P2_INNER, jnp.float32)
        return p1, p2

    # f32 path (matches the PyTorch module's numerics), both label types, B=2.
    p1, p2 = make_inputs(2)
    for lt, od in ((0, 5), (1, 6)):
        out = jax.block_until_ready(
            switch_equivariant_agent(p1, p2, packed_f32, label_type=lt))
        ref = _ref_forward(p1, p2, move_params, switch_params, label_type=lt)
        assert out.shape == (2, od), out.shape
        assert jnp.allclose(out, ref, atol=2e-4, rtol=2e-4), (lt, out, ref)

    # Multi-tile + padding path (B=100 -> 2 grid steps of TB=56), f32.
    p1b, p2b = make_inputs(100)
    out = jax.block_until_ready(
        switch_equivariant_agent(p1b, p2b, packed_f32, label_type=0))
    ref = _ref_forward(p1b, p2b, move_params, switch_params, label_type=0)
    assert out.shape == (100, 5), out.shape
    assert jnp.allclose(out, ref, atol=2e-4, rtol=2e-4)

    # Default bf16 compute path (bf16 MXU operands, f32 accumulation), checked
    # against a reference that applies the identical casting.
    out_bf = jax.block_until_ready(
        switch_equivariant_agent(p1, p2, packed_bf16, label_type=0))
    ref_bf = _ref_forward(p1, p2, move_params, switch_params, label_type=0,
                          compute_dtype=jnp.bfloat16)
    assert out_bf.shape == (2, 5), out_bf.shape
    assert jnp.allclose(out_bf, ref_bf, atol=2e-2, rtol=2e-2), (out_bf, ref_bf)

    print("KERNEL_OK")
</pallas_src>

<mosaic_0001>
module attributes {stable_mosaic.version = 11 : i64} {
  func.func @_agent_kernel(%arg0: i32, %arg1: memref<8x144xf32, #tpu.memory_space<vmem>>, %arg2: memref<144x384xf32, #tpu.memory_space<vmem>>, %arg3: memref<1x384xf32, #tpu.memory_space<vmem>>, %arg4: memref<8x128x128xf32, #tpu.memory_space<vmem>>, %arg5: memref<8x1x128xf32, #tpu.memory_space<vmem>>, %arg6: memref<128x3xf32, #tpu.memory_space<vmem>>, %arg7: memref<1x3xf32, #tpu.memory_space<vmem>>, %arg8: memref<8x5xf32, #tpu.memory_space<vmem>>, %arg9: memref<16x128xf32, #tpu.memory_space<vmem>>) attributes {dimension_semantics = [#tpu.dimension_semantics<parallel>], iteration_bounds = array<i64: 1>, scalar_prefetch = 0 : i64, scratch_operands = 1 : i64, tpu.core_type = #tpu.core_type<tc>, window_params = [{transform_indices = @transform_0, window_bounds = array<i64: 8, 144>}, {pipeline_mode = #tpu.pipeline_mode<synchronous>, transform_indices = @transform_1, window_bounds = array<i64: 144, 384>}, {pipeline_mode = #tpu.pipeline_mode<synchronous>, transform_indices = @transform_2, window_bounds = array<i64: 1, 384>}, {pipeline_mode = #tpu.pipeline_mode<synchronous>, transform_indices = @transform_3, window_bounds = array<i64: 8, 128, 128>}, {pipeline_mode = #tpu.pipeline_mode<synchronous>, transform_indices = @transform_4, window_bounds = array<i64: 8, 1, 128>}, {pipeline_mode = #tpu.pipeline_mode<synchronous>, transform_indices = @transform_5, window_bounds = array<i64: 128, 3>}, {pipeline_mode = #tpu.pipeline_mode<synchronous>, transform_indices = @transform_6, window_bounds = array<i64: 1, 3>}, {transform_indices = @transform_7, window_bounds = array<i64: 8, 5>}]} {
    %c0 = arith.constant 0 : index
    %c0_0 = arith.constant 0 : index
    %0 = vector.load %arg1[%c0, %c0_0] : memref<8x144xf32, #tpu.memory_space<vmem>>, vector<8x144xf32>
    %c0_1 = arith.constant 0 : index
    %c0_2 = arith.constant 0 : index
    %1 = vector.load %arg2[%c0_1, %c0_2] : memref<144x384xf32, #tpu.memory_space<vmem>>, vector<144x384xf32>
    %cst = arith.constant dense<0.000000e+00> : vector<8x384xf32>
    %2 = tpu.matmul %0, %1, %cst {dimension_numbers = #tpu.dot_dimension_numbers<[1], [0], [0], [1], [0, 0, 1, 1], [], []>} : vector<8x144xf32>, vector<144x384xf32>, vector<8x384xf32> -> vector<8x384xf32>
    %c0_3 = arith.constant 0 : index
    %c0_4 = arith.constant 0 : index
    %3 = vector.load %arg3[%c0_3, %c0_4] : memref<1x384xf32, #tpu.memory_space<vmem>>, vector<1x384xf32>
    %4 = vector.broadcast %3 : vector<1x384xf32> to vector<8x384xf32>
    %5 = arith.addf %2, %4 : vector<8x384xf32>
    %cst_5 = arith.constant 0.000000e+00 : f32
    %6 = vector.broadcast %cst_5 : f32 to vector<8x384xf32>
    %7 = arith.maximumf %5, %6 : vector<8x384xf32>
    %8 = vector.extract_strided_slice %7 {offsets = [0, 0], sizes = [8, 128], strides = [1, 1]} : vector<8x384xf32> to vector<8x128xf32>
    %9 = vector.extract_strided_slice %7 {offsets = [0, 128], sizes = [8, 128], strides = [1, 1]} : vector<8x384xf32> to vector<8x128xf32>
    %c0_6 = arith.constant 0 : index
    %c0_7 = arith.constant 0 : index
    %10 = vector.load %arg9[%c0_6, %c0_7] : memref<16x128xf32, #tpu.memory_space<vmem>>, vector<8x128xf32>
    tpu.vector_store %arg9[%c0_6, %c0_7], %9 {strides = array<i32>} : memref<16x128xf32, #tpu.memory_space<vmem>>, vector<8x128xf32>,
    %11 = vector.extract_strided_slice %7 {offsets = [0, 256], sizes = [8, 128], strides = [1, 1]} : vector<8x384xf32> to vector<8x128xf32>
    %c8 = arith.constant 8 : index
    %c0_8 = arith.constant 0 : index
    %12 = vector.load %arg9[%c8, %c0_8] : memref<16x128xf32, #tpu.memory_space<vmem>>, vector<8x128xf32>
    tpu.vector_store %arg9[%c8, %c0_8], %11 {strides = array<i32>} : memref<16x128xf32, #tpu.memory_space<vmem>>, vector<8x128xf32>,
    %c0_9 = arith.constant 0 : index
    %c0_10 = arith.constant 0 : index
    %13 = vector.load %arg9[%c0_9, %c0_10] : memref<16x128xf32, #tpu.memory_space<vmem>>, vector<16x128xf32>
    %c0_11 = arith.constant 0 : index
    %c0_12 = arith.constant 0 : index
    %c0_13 = arith.constant 0 : index
    %14 = vector.load %arg4[%c0_11, %c0_12, %c0_13] : memref<8x128x128xf32, #tpu.memory_space<vmem>>, vector<1x128x128xf32>
    %15 = vector.shape_cast %14 : vector<1x128x128xf32> to vector<128x128xf32>
    %cst_14 = arith.constant dense<0.000000e+00> : vector<8x128xf32>
    %16 = tpu.matmul %8, %15, %cst_14 {dimension_numbers = #tpu.dot_dimension_numbers<[1], [0], [0], [1], [0, 0, 1, 1], [], []>} : vector<8x128xf32>, vector<128x128xf32>, vector<8x128xf32> -> vector<8x128xf32>
    %c0_15 = arith.constant 0 : index
    %c0_16 = arith.constant 0 : index
    %c0_17 = arith.constant 0 : index
    %17 = vector.load %arg5[%c0_15, %c0_16, %c0_17] : memref<8x1x128xf32, #tpu.memory_space<vmem>>, vector<1x1x128xf32>
    %18 = vector.shape_cast %17 : vector<1x1x128xf32> to vector<1x128xf32>
    %19 = vector.broadcast %18 : vector<1x128xf32> to vector<8x128xf32>
    %20 = arith.addf %16, %19 : vector<8x128xf32>
    %cst_18 = arith.constant 0.000000e+00 : f32
    %21 = vector.broadcast %cst_18 : f32 to vector<8x128xf32>
    %22 = arith.maximumf %20, %21 : vector<8x128xf32>
    %c1 = arith.constant 1 : index
    %c0_19 = arith.constant 0 : index
    %c0_20 = arith.constant 0 : index
    %23 = vector.load %arg4[%c1, %c0_19, %c0_20] : memref<8x128x128xf32, #tpu.memory_space<vmem>>, vector<1x128x128xf32>
    %24 = vector.shape_cast %23 : vector<1x128x128xf32> to vector<128x128xf32>
    %cst_21 = arith.constant dense<0.000000e+00> : vector<8x128xf32>
    %25 = tpu.matmul %22, %24, %cst_21 {dimension_numbers = #tpu.dot_dimension_numbers<[1], [0], [0], [1], [0, 0, 1, 1], [], []>} : vector<8x128xf32>, vector<128x128xf32>, vector<8x128xf32> -> vector<8x128xf32>
    %c1_22 = arith.constant 1 : index
    %c0_23 = arith.constant 0 : index
    %c0_24 = arith.constant 0 : index
    %26 = vector.load %arg5[%c1_22, %c0_23, %c0_24] : memref<8x1x128xf32, #tpu.memory_space<vmem>>, vector<1x1x128xf32>
    %27 = vector.shape_cast %26 : vector<1x1x128xf32> to vector<1x128xf32>
    %28 = vector.broadcast %27 : vector<1x128xf32> to vector<8x128xf32>
    %29 = arith.addf %25, %28 : vector<8x128xf32>
    %cst_25 = arith.constant 0.000000e+00 : f32
    %30 = vector.broadcast %cst_25 : f32 to vector<8x128xf32>
    %31 = arith.maximumf %29, %30 : vector<8x128xf32>
    %c2 = arith.constant 2 : index
    %c0_26 = arith.constant 0 : index
    %c0_27 = arith.constant 0 : index
    %32 = vector.load %arg4[%c2, %c0_26, %c0_27] : memref<8x128x128xf32, #tpu.memory_space<vmem>>, vector<1x128x128xf32>
    %33 = vector.shape_cast %32 : vector<1x128x128xf32> to vector<128x128xf32>
    %cst_28 = arith.constant dense<0.000000e+00> : vector<8x128xf32>
    %34 = tpu.matmul %31, %33, %cst_28 {dimension_numbers = #tpu.dot_dimension_numbers<[1], [0], [0], [1], [0, 0, 1, 1], [], []>} : vector<8x128xf32>, vector<128x128xf32>, vector<8x128xf32> -> vector<8x128xf32>
    %c2_29 = arith.constant 2 : index
    %c0_30 = arith.constant 0 : index
    %c0_31 = arith.constant 0 : index
    %35 = vector.load %arg5[%c2_29, %c0_30, %c0_31] : memref<8x1x128xf32, #tpu.memory_space<vmem>>, vector<1x1x128xf32>
    %36 = vector.shape_cast %35 : vector<1x1x128xf32> to vector<1x128xf32>
    %37 = vector.broadcast %36 : vector<1x128xf32> to vector<8x128xf32>
    %38 = arith.addf %34, %37 : vector<8x128xf32>
    %cst_32 = arith.constant 0.000000e+00 : f32
    %39 = vector.broadcast %cst_32 : f32 to vector<8x128xf32>
    %40 = arith.maximumf %38, %39 : vector<8x128xf32>
    %c3 = arith.constant 3 : index
    %c0_33 = arith.constant 0 : index
    %c0_34 = arith.constant 0 : index
    %41 = vector.load %arg4[%c3, %c0_33, %c0_34] : memref<8x128x128xf32, #tpu.memory_space<vmem>>, vector<1x128x128xf32>
    %42 = vector.shape_cast %41 : vector<1x128x128xf32> to vector<128x128xf32>
    %cst_35 = arith.constant dense<0.000000e+00> : vector<8x128xf32>
    %43 = tpu.matmul %40, %42, %cst_35 {dimension_numbers = #tpu.dot_dimension_numbers<[1], [0], [0], [1], [0, 0, 1, 1], [], []>} : vector<8x128xf32>, vector<128x128xf32>, vector<8x128xf32> -> vector<8x128xf32>
    %c3_36 = arith.constant 3 : index
    %c0_37 = arith.constant 0 : index
    %c0_38 = arith.constant 0 : index
    %44 = vector.load %arg5[%c3_36, %c0_37, %c0_38] : memref<8x1x128xf32, #tpu.memory_space<vmem>>, vector<1x1x128xf32>
    %45 = vector.shape_cast %44 : vector<1x1x128xf32> to vector<1x128xf32>
    %46 = vector.broadcast %45 : vector<1x128xf32> to vector<8x128xf32>
    %47 = arith.addf %43, %46 : vector<8x128xf32>
    %cst_39 = arith.constant 0.000000e+00 : f32
    %48 = vector.broadcast %cst_39 : f32 to vector<8x128xf32>
    %49 = arith.maximumf %47, %48 : vector<8x128xf32>
    %c4 = arith.constant 4 : index
    %c0_40 = arith.constant 0 : index
    %c0_41 = arith.constant 0 : index
    %50 = vector.load %arg4[%c4, %c0_40, %c0_41] : memref<8x128x128xf32, #tpu.memory_space<vmem>>, vector<1x128x128xf32>
    %51 = vector.shape_cast %50 : vector<1x128x128xf32> to vector<128x128xf32>
    %cst_42 = arith.constant dense<0.000000e+00> : vector<16x128xf32>
    %52 = tpu.matmul %13, %51, %cst_42 {dimension_numbers = #tpu.dot_dimension_numbers<[1], [0], [0], [1], [0, 0, 1, 1], [], []>} : vector<16x128xf32>, vector<128x128xf32>, vector<16x128xf32> -> vector<16x128xf32>
    %c4_43 = arith.constant 4 : index
    %c0_44 = arith.constant 0 : index
    %c0_45 = arith.constant 0 : index
    %53 = vector.load %arg5[%c4_43, %c0_44, %c0_45] : memref<8x1x128xf32, #tpu.memory_space<vmem>>, vector<1x1x128xf32>
    %54 = vector.shape_cast %53 : vector<1x1x128xf32> to vector<1x128xf32>
    %55 = vector.broadcast %54 : vector<1x128xf32> to vector<16x128xf32>
    %56 = arith.addf %52, %55 : vector<16x128xf32>
    %cst_46 = arith.constant 0.000000e+00 : f32
    %57 = vector.broadcast %cst_46 : f32 to vector<16x128xf32>
    %58 = arith.maximumf %56, %57 : vector<16x128xf32>
    %c5 = arith.constant 5 : index
    %c0_47 = arith.constant 0 : index
    %c0_48 = arith.constant 0 : index
    %59 = vector.load %arg4[%c5, %c0_47, %c0_48] : memref<8x128x128xf32, #tpu.memory_space<vmem>>, vector<1x128x128xf32>
    %60 = vector.shape_cast %59 : vector<1x128x128xf32> to vector<128x128xf32>
    %cst_49 = arith.constant dense<0.000000e+00> : vector<16x128xf32>
    %61 = tpu.matmul %58, %60, %cst_49 {dimension_numbers = #tpu.dot_dimension_numbers<[1], [0], [0], [1], [0, 0, 1, 1], [], []>} : vector<16x128xf32>, vector<128x128xf32>, vector<16x128xf32> -> vector<16x128xf32>
    %c5_50 = arith.constant 5 : index
    %c0_51 = arith.constant 0 : index
    %c0_52 = arith.constant 0 : index
    %62 = vector.load %arg5[%c5_50, %c0_51, %c0_52] : memref<8x1x128xf32, #tpu.memory_space<vmem>>, vector<1x1x128xf32>
    %63 = vector.shape_cast %62 : vector<1x1x128xf32> to vector<1x128xf32>
    %64 = vector.broadcast %63 : vector<1x128xf32> to vector<16x128xf32>
    %65 = arith.addf %61, %64 : vector<16x128xf32>
    %cst_53 = arith.constant 0.000000e+00 : f32
    %66 = vector.broadcast %cst_53 : f32 to vector<16x128xf32>
    %67 = arith.maximumf %65, %66 : vector<16x128xf32>
    %c6 = arith.constant 6 : index
    %c0_54 = arith.constant 0 : index
    %c0_55 = arith.constant 0 : index
    %68 = vector.load %arg4[%c6, %c0_54, %c0_55] : memref<8x128x128xf32, #tpu.memory_space<vmem>>, vector<1x128x128xf32>
    %69 = vector.shape_cast %68 : vector<1x128x128xf32> to vector<128x128xf32>
    %cst_56 = arith.constant dense<0.000000e+00> : vector<16x128xf32>
    %70 = tpu.matmul %67, %69, %cst_56 {dimension_numbers = #tpu.dot_dimension_numbers<[1], [0], [0], [1], [0, 0, 1, 1], [], []>} : vector<16x128xf32>, vector<128x128xf32>, vector<16x128xf32> -> vector<16x128xf32>
    %c6_57 = arith.constant 6 : index
    %c0_58 = arith.constant 0 : index
    %c0_59 = arith.constant 0 : index
    %71 = vector.load %arg5[%c6_57, %c0_58, %c0_59] : memref<8x1x128xf32, #tpu.memory_space<vmem>>, vector<1x1x128xf32>
    %72 = vector.shape_cast %71 : vector<1x1x128xf32> to vector<1x128xf32>
    %73 = vector.broadcast %72 : vector<1x128xf32> to vector<16x128xf32>
    %74 = arith.addf %70, %73 : vector<16x128xf32>
    %cst_60 = arith.constant 0.000000e+00 : f32
    %75 = vector.broadcast %cst_60 : f32 to vector<16x128xf32>
    %76 = arith.maximumf %74, %75 : vector<16x128xf32>
    %c7 = arith.constant 7 : index
    %c0_61 = arith.constant 0 : index
    %c0_62 = arith.constant 0 : index
    %77 = vector.load %arg4[%c7, %c0_61, %c0_62] : memref<8x128x128xf32, #tpu.memory_space<vmem>>, vector<1x128x128xf32>
    %78 = vector.shape_cast %77 : vector<1x128x128xf32> to vector<128x128xf32>
    %cst_63 = arith.constant dense<0.000000e+00> : vector<16x128xf32>
    %79 = tpu.matmul %76, %78, %cst_63 {dimension_numbers = #tpu.dot_dimension_numbers<[1], [0], [0], [1], [0, 0, 1, 1], [], []>} : vector<16x128xf32>, vector<128x128xf32>, vector<16x128xf32> -> vector<16x128xf32>
    %c7_64 = arith.constant 7 : index
    %c0_65 = arith.constant 0 : index
    %c0_66 = arith.constant 0 : index
    %80 = vector.load %arg5[%c7_64, %c0_65, %c0_66] : memref<8x1x128xf32, #tpu.memory_space<vmem>>, vector<1x1x128xf32>
    %81 = vector.shape_cast %80 : vector<1x1x128xf32> to vector<1x128xf32>
    %82 = vector.broadcast %81 : vector<1x128xf32> to vector<16x128xf32>
    %83 = arith.addf %79, %82 : vector<16x128xf32>
    %cst_67 = arith.constant 0.000000e+00 : f32
    %84 = vector.broadcast %cst_67 : f32 to vector<16x128xf32>
    %85 = arith.maximumf %83, %84 : vector<16x128xf32>
    %c0_68 = arith.constant 0 : index
    %c0_69 = arith.constant 0 : index
    %86 = vector.load %arg7[%c0_68, %c0_69] : memref<1x3xf32, #tpu.memory_space<vmem>>, vector<1x3xf32>
    %c0_70 = arith.constant 0 : index
    %c0_71 = arith.constant 0 : index
    %87 = vector.load %arg6[%c0_70, %c0_71] : memref<128x3xf32, #tpu.memory_space<vmem>>, vector<128x3xf32>
    %cst_72 = arith.constant dense<0.000000e+00> : vector<8x3xf32>
    %88 = tpu.matmul %49, %87, %cst_72 {dimension_numbers = #tpu.dot_dimension_numbers<[1], [0], [0], [1], [0, 0, 1, 1], [], []>} : vector<8x128xf32>, vector<128x3xf32>, vector<8x3xf32> -> vector<8x3xf32>
    %c0_73 = arith.constant 0 : index
    %c0_74 = arith.constant 0 : index
    %89 = vector.load %arg6[%c0_73, %c0_74] : memref<128x3xf32, #tpu.memory_space<vmem>>, vector<128x3xf32>
    %cst_75 = arith.constant dense<0.000000e+00> : vector<16x3xf32>
    %90 = tpu.matmul %85, %89, %cst_75 {dimension_numbers = #tpu.dot_dimension_numbers<[1], [0], [0], [1], [0, 0, 1, 1], [], []>} : vector<16x128xf32>, vector<128x3xf32>, vector<16x3xf32> -> vector<16x3xf32>
    %91 = vector.extract_strided_slice %88 {offsets = [0, 0], sizes = [8, 2], strides = [1, 1]} : vector<8x3xf32> to vector<8x2xf32>
    %92 = vector.extract_strided_slice %86 {offsets = [0, 0], sizes = [1, 2], strides = [1, 1]} : vector<1x3xf32> to vector<1x2xf32>
    %93 = vector.broadcast %92 : vector<1x2xf32> to vector<8x2xf32>
    %94 = arith.addf %91, %93 : vector<8x2xf32>
    %95 = vector.extract_strided_slice %90 {offsets = [0, 2], sizes = [8, 1], strides = [1, 1]} : vector<16x3xf32> to vector<8x1xf32>
    %96 = vector.extract_strided_slice %86 {offsets = [0, 2], sizes = [1, 1], strides = [1, 1]} : vector<1x3xf32> to vector<1x1xf32>
    %97 = vector.broadcast %96 : vector<1x1xf32> to vector<8x1xf32>
    %98 = arith.addf %95, %97 : vector<8x1xf32>
    %99 = vector.extract_strided_slice %90 {offsets = [8, 2], sizes = [8, 1], strides = [1, 1]} : vector<16x3xf32> to vector<8x1xf32>
    %100 = vector.extract_strided_slice %86 {offsets = [0, 2], sizes = [1, 1], strides = [1, 1]} : vector<1x3xf32> to vector<1x1xf32>
    %101 = vector.broadcast %100 : vector<1x1xf32> to vector<8x1xf32>
    %102 = arith.addf %99, %101 : vector<8x1xf32>
    %c0_76 = arith.constant 0 : index
    %c0_77 = arith.constant 0 : index
    %103 = vector.load %arg8[%c0_76, %c0_77] : memref<8x5xf32, #tpu.memory_space<vmem>>, vector<8x2xf32>
    tpu.vector_store %arg8[%c0_76, %c0_77], %94 {strides = array<i32>} : memref<8x5xf32, #tpu.memory_space<vmem>>, vector<8x2xf32>,
    %cst_78 = arith.constant 0.000000e+00 : f32
    %104 = vector.broadcast %cst_78 : f32 to vector<8x2xf32>
    %c0_79 = arith.constant 0 : index
    %c2_80 = arith.constant 2 : index
    %105 = vector.load %arg8[%c0_79, %c2_80] : memref<8x5xf32, #tpu.memory_space<vmem>>, vector<8x2xf32>
    tpu.vector_store %arg8[%c0_79, %c2_80], %104 {strides = array<i32>} : memref<8x5xf32, #tpu.memory_space<vmem>>, vector<8x2xf32>,
    %106 = arith.maximumf %98, %102 : vector<8x1xf32>
    %c0_81 = arith.constant 0 : index
    %c4_82 = arith.constant 4 : index
    %107 = vector.load %arg8[%c0_81, %c4_82] : memref<8x5xf32, #tpu.memory_space<vmem>>, vector<8x1xf32>
    tpu.vector_store %arg8[%c0_81, %c4_82], %106 {strides = array<i32>} : memref<8x5xf32, #tpu.memory_space<vmem>>, vector<8x1xf32>,
    return
  }
  func.func @transform_0(%arg0: i32) -> (i32, i32) {
    %c0_i32 = arith.constant 0 : i32
    %c0_i32_0 = arith.constant 0 : i32
    return %arg0, %c0_i32 : i32, i32
  }
  func.func @transform_1(%arg0: i32) -> (i32, i32) {
    %c0_i32 = arith.constant 0 : i32
    %c0_i32_0 = arith.constant 0 : i32
    %c0_i32_1 = arith.constant 0 : i32
    return %c0_i32, %c0_i32_0 : i32, i32
  }
  func.func @transform_2(%arg0: i32) -> (i32, i32) {
    %c0_i32 = arith.constant 0 : i32
    %c0_i32_0 = arith.constant 0 : i32
    %c0_i32_1 = arith.constant 0 : i32
    return %c0_i32, %c0_i32_0 : i32, i32
  }
  func.func @transform_3(%arg0: i32) -> (i32, i32, i32) {
    %c0_i32 = arith.constant 0 : i32
    %c0_i32_0 = arith.constant 0 : i32
    %c0_i32_1 = arith.constant 0 : i32
    %c0_i32_2 = arith.constant 0 : i32
    return %c0_i32, %c0_i32_0, %c0_i32_1 : i32, i32, i32
  }
  func.func @transform_4(%arg0: i32) -> (i32, i32, i32) {
    %c0_i32 = arith.constant 0 : i32
    %c0_i32_0 = arith.constant 0 : i32
    %c0_i32_1 = arith.constant 0 : i32
    %c0_i32_2 = arith.constant 0 : i32
    return %c0_i32, %c0_i32_0, %c0_i32_1 : i32, i32, i32
  }
  func.func @transform_5(%arg0: i32) -> (i32, i32) {
    %c0_i32 = arith.constant 0 : i32
    %c0_i32_0 = arith.constant 0 : i32
    %c0_i32_1 = arith.constant 0 : i32
    return %c0_i32, %c0_i32_0 : i32, i32
  }
  func.func @transform_6(%arg0: i32) -> (i32, i32) {
    %c0_i32 = arith.constant 0 : i32
    %c0_i32_0 = arith.constant 0 : i32
    %c0_i32_1 = arith.constant 0 : i32
    return %c0_i32, %c0_i32_0 : i32, i32
  }
  func.func @transform_7(%arg0: i32) -> (i32, i32) {
    %c0_i32 = arith.constant 0 : i32
    %c0_i32_0 = arith.constant 0 : i32
    return %arg0, %c0_i32 : i32, i32
  }
}

</mosaic_0001>

<llo_original>
// kernel: switch_equivariant_agent.1
$region0: #{switch_equivariant_agent.1}
  #allocation0 [shape = 'u32[]', space=smem, size = 0x4, offset = 0x4, fixed_abs, tag = 'smem constant byte address 0x4 - core index']
  #allocation1 [shape = 'u32[144,128]{1,0:T(1,128)}', space=vmem, size = 0x12000, scoped, tag = 'internal scratch']
  #allocation2 [shape = 'f32[16,128]{1,0:T(8,128)}', space=vmem, size = 0x2000, scoped, tag = 'scratch operand']
  %s0 = inlined_call_operand.vmem [shape: f32[8,144], index: 0, kind: input, shape index: {}]
  %s1 = inlined_call_operand.hbm [shape: f32[144,384], index: 1, kind: input, shape index: {}]
  %s2 = inlined_call_operand.vmem [shape: f32[1,384], index: 2, kind: input, shape index: {}]
  %s3 = inlined_call_operand.hbm [shape: f32[8,128,128], index: 3, kind: input, shape index: {}]
  %s4 = inlined_call_operand.vmem [shape: f32[8,1,128], index: 4, kind: input, shape index: {}]
  %s5 = inlined_call_operand.vmem [shape: f32[128,3], index: 5, kind: input, shape index: {}]
  %s6 = inlined_call_operand.vmem [shape: f32[1,3], index: 6, kind: input, shape index: {}]
  %s7 = inlined_call_operand.vmem [shape: f32[8,5], index: 7, kind: output, shape index: {}]
  %s8 = sld [smem:[#allocation0]]
  $region46: #{switch_equivariant_agent.1} parent=0
    _
  %s10 = ssub.s32 1, %s8
  %s11 = scalar_select 0, %s10, %s8
  $region1: #{switch_equivariant_agent.1} parent=0
    #allocation3 [shape = 'u8[221184]{0}', space=vmem, size = 0x36000, scoped, tag = 'input window, operand 1, single buffered']
    #allocation4 [shape = 's32[1]{0}', space=sflag, size = 0x4, scoped, tag = 'scoped memory for switch_equivariant_agent.1']
    #allocation5 [shape = 'u8[524288]{0}', space=vmem, size = 0x80000, scoped, tag = 'input window, operand 3, single buffered']
    #allocation6 [shape = 's32[1]{0}', space=sflag, size = 0x4, scoped, tag = 'scoped memory for switch_equivariant_agent.1']
    %12 = vsyncpa [#allocation4], 0
    %13 = vsyncpa [#allocation6], 0
    // Predicated region
    $region2: #{switch_equivariant_agent.1} parent=1 // pred_check
      _
    $region3: #{switch_equivariant_agent.1} parent=1 // pred_check_branch
      %15 = sbr.rel (0) target = $region5
    $region4: #{switch_equivariant_agent.1} parent=1 // pred_region
      _
    $region5: #{switch_equivariant_agent.1} parent=1 // pred_fallthru
      _
    // Predicated region
    $region6: #{switch_equivariant_agent.1} parent=1 // pred_check
      _
    $region7: #{switch_equivariant_agent.1} parent=1 // pred_check_branch
      %17 = sbr.rel (0) target = $region9
    $region8: #{switch_equivariant_agent.1} parent=1 // pred_region
      %s19 = ssub.s32 6912, 6912
      %20 = vsyncadd [#allocation4], %s19
      %s21 = sshll.u32 [#allocation3], 4
      %s22 = int_to_ptr.vmem [resolvable:$true] %s21
      %27 = dma.hbm_to_vmem [thread:$0]  %s1, 6912, %s22, [#allocation4], 384, 384, 24
    $region9: #{switch_equivariant_agent.1} parent=1 // pred_fallthru
      _
    // Predicated region
    $region10: #{switch_equivariant_agent.1} parent=1 // pred_check
      _
    $region11: #{switch_equivariant_agent.1} parent=1 // pred_check_branch
      %29 = sbr.rel (0) target = $region13
    $region12: #{switch_equivariant_agent.1} parent=1 // pred_region
      _
    $region13: #{switch_equivariant_agent.1} parent=1 // pred_fallthru
      _
    // Predicated region
    $region14: #{switch_equivariant_agent.1} parent=1 // pred_check
      _
    $region15: #{switch_equivariant_agent.1} parent=1 // pred_check_branch
      %31 = sbr.rel (0) target = $region17
    $region16: #{switch_equivariant_agent.1} parent=1 // pred_region
      %s33 = ssub.s32 16384, 16384
      %34 = vsyncadd [#allocation6], %s33
      %s35 = sshll.u32 [#allocation5], 4
      %s36 = int_to_ptr.vmem [resolvable:$true] %s35
      %41 = dma.hbm_to_vmem [thread:$0]  %s3, 16384, %s36, [#allocation6], 128, 128, 8
    $region17: #{switch_equivariant_agent.1} parent=1 // pred_fallthru
      _
    // Predicated region
    $region18: #{switch_equivariant_agent.1} parent=1 // pred_check
      _
    $region19: #{switch_equivariant_agent.1} parent=1 // pred_check_branch
      %43 = sbr.rel (0) target = $region21
    $region20: #{switch_equivariant_agent.1} parent=1 // pred_region
      _
    $region21: #{switch_equivariant_agent.1} parent=1 // pred_fallthru
      _
    // Predicated region
    $region22: #{switch_equivariant_agent.1} parent=1 // pred_check
      _
    $region23: #{switch_equivariant_agent.1} parent=1 // pred_check_branch
      %45 = sbr.rel (0) target = $region25
    $region24: #{switch_equivariant_agent.1} parent=1 // pred_region
      _
    $region25: #{switch_equivariant_agent.1} parent=1 // pred_fallthru
      _
    // Predicated region
    $region26: #{switch_equivariant_agent.1} parent=1 // pred_check
      _
    $region27: #{switch_equivariant_agent.1} parent=1 // pred_check_branch
      %47 = sbr.rel (0) target = $region29
    $region28: #{switch_equivariant_agent.1} parent=1 // pred_region
      _
    $region29: #{switch_equivariant_agent.1} parent=1 // pred_fallthru
      _
    // Predicated region
    $region30: #{switch_equivariant_agent.1} parent=1 // pred_check
      _
    $region31: #{switch_equivariant_agent.1} parent=1 // pred_check_branch
      %49 = sbr.rel (0) target = $region33
    $region32: #{switch_equivariant_agent.1} parent=1 // pred_region
      %50 = dma.done [#allocation4], 6912
    $region33: #{switch_equivariant_agent.1} parent=1 // pred_fallthru
      _
    // Predicated region
    $region34: #{switch_equivariant_agent.1} parent=1 // pred_check
      _
    $region35: #{switch_equivariant_agent.1} parent=1 // pred_check_branch
      %52 = sbr.rel (0) target = $region37
    $region36: #{switch_equivariant_agent.1} parent=1 // pred_region
      %53 = dma.done [#allocation6], 16384
    $region37: #{switch_equivariant_agent.1} parent=1 // pred_fallthru
      _
    %v54 = vld [vmem:[%s0] sm:$0xff]
    %v55 = vld [vmem:[%s0 + $0x8] sm:$0xff]
    %v56 = vld [vmem:[#allocation3] sm:$0xff]
    %v57 = vld [vmem:[#allocation3 + $0x8] sm:$0xff]
    %v58 = vld [vmem:[#allocation3 + $0x10] sm:$0xff]
    %v59 = vld [vmem:[#allocation3 + $0x18] sm:$0xff]
    %v60 = vld [vmem:[#allocation3 + $0x20] sm:$0xff]
    %v61 = vld [vmem:[#allocation3 + $0x28] sm:$0xff]
    %v62 = vld [vmem:[#allocation3 + $0x30] sm:$0xff]
    %v63 = vld [vmem:[#allocation3 + $0x38] sm:$0xff]
    %v64 = vld [vmem:[#allocation3 + $0x40] sm:$0xff]
    %v65 = vld [vmem:[#allocation3 + $0x48] sm:$0xff]
    %v66 = vld [vmem:[#allocation3 + $0x50] sm:$0xff]
    %v67 = vld [vmem:[#allocation3 + $0x58] sm:$0xff]
    %v68 = vld [vmem:[#allocation3 + $0x60] sm:$0xff]
    %v69 = vld [vmem:[#allocation3 + $0x68] sm:$0xff]
    %v70 = vld [vmem:[#allocation3 + $0x70] sm:$0xff]
    %v71 = vld [vmem:[#allocation3 + $0x78] sm:$0xff]
    %v72 = vld [vmem:[#allocation3 + $0x80] sm:$0xff]
    %v73 = vld [vmem:[#allocation3 + $0x88] sm:$0xff]
    %v74 = vld [vmem:[#allocation3 + $0x90] sm:$0xff]
    %v75 = vld [vmem:[#allocation3 + $0x98] sm:$0xff]
    %v76 = vld [vmem:[#allocation3 + $0xa0] sm:$0xff]
    %v77 = vld [vmem:[#allocation3 + $0xa8] sm:$0xff]
    %v78 = vld [vmem:[#allocation3 + $0xb0] sm:$0xff]
    %v79 = vld [vmem:[#allocation3 + $0xb8] sm:$0xff]
    %v80 = vld [vmem:[#allocation3 + $0xc0] sm:$0xff]
    %v81 = vld [vmem:[#allocation3 + $0xc8] sm:$0xff]
    %v82 = vld [vmem:[#allocation3 + $0xd0] sm:$0xff]
    %v83 = vld [vmem:[#allocation3 + $0xd8] sm:$0xff]
    %v84 = vld [vmem:[#allocation3 + $0xe0] sm:$0xff]
    %v85 = vld [vmem:[#allocation3 + $0xe8] sm:$0xff]
    %v86 = vld [vmem:[#allocation3 + $0xf0] sm:$0xff]
    %v87 = vld [vmem:[#allocation3 + $0xf8] sm:$0xff]
    %v88 = vld [vmem:[#allocation3 + $0x100] sm:$0xff]
    %v89 = vld [vmem:[#allocation3 + $0x108] sm:$0xff]
    %v90 = vld [vmem:[#allocation3 + $0x110] sm:$0xff]
    %v91 = vld [vmem:[#allocation3 + $0x118] sm:$0xff]
    %v92 = vld [vmem:[#allocation3 + $0x120] sm:$0xff]
    %v93 = vld [vmem:[#allocation3 + $0x128] sm:$0xff]
    %v94 = vld [vmem:[#allocation3 + $0x130] sm:$0xff]
    %v95 = vld [vmem:[#allocation3 + $0x138] sm:$0xff]
    %v96 = vld [vmem:[#allocation3 + $0x140] sm:$0xff]
    %v97 = vld [vmem:[#allocation3 + $0x148] sm:$0xff]
    %v98 = vld [vmem:[#allocation3 + $0x150] sm:$0xff]
    %v99 = vld [vmem:[#allocation3 + $0x158] sm:$0xff]
    %v100 = vld [vmem:[#allocation3 + $0x160] sm:$0xff]
    %v101 = vld [vmem:[#allocation3 + $0x168] sm:$0xff]
    %v102 = vld [vmem:[#allocation3 + $0x170] sm:$0xff]
    %v103 = vld [vmem:[#allocation3 + $0x178] sm:$0xff]
    %v104 = vld [vmem:[#allocation3 + $0x180] sm:$0xff]
    %v105 = vld [vmem:[#allocation3 + $0x188] sm:$0xff]
    %v106 = vld [vmem:[#allocation3 + $0x190] sm:$0xff]
    %v107 = vld [vmem:[#allocation3 + $0x198] sm:$0xff]
    %v108 = vld [vmem:[#allocation3 + $0x1a0] sm:$0xff]
    %v109 = vld [vmem:[#allocation3 + $0x1a8] sm:$0xff]
    %v110 = vld [vmem:[%s2] sm:$0x7]
    %v112 = vlaneseq
    %v113 = vshrl.u32 %v112, 7
    %v114 = vsub.s32 0, %v113
    %v115 = vrot.slane %v110, %v114
    %v116 = vlaneseq
    %v117 = vshrl.u32 %v116, 7
    %v118 = vsub.s32 1, %v117
    %v119 = vrot.slane %v110, %v118
    %v120 = vlaneseq
    %v121 = vshrl.u32 %v120, 7
    %v122 = vsub.s32 2, %v121
    %v123 = vrot.slane %v110, %v122
    %vm127 = vcmask 130048
    %v129 = vsel %vm127, %v55, 0
    %131 = vmatprep.subr.mxu0 %v57
    %132 = vmatpush1.msra.mxu0 %v56
    %133 = vmatprep.subr.mxu0 %v60
    %134 = vmatpush1.msra.mxu0 %v59
    %135 = vmatprep.subr.mxu0 %v63
    %136 = vmatpush1.msra.mxu0 %v62
    %137 = vmatprep.subr.mxu0 %v66
    %138 = vmatpush1.msra.mxu0 %v65
    %139 = vmatprep.subr.mxu0 %v69
    %140 = vmatpush1.msra.mxu0 %v68
    %141 = vmatprep.subr.mxu0 %v72
    %142 = vmatpush1.msra.mxu0 %v71
    %143 = vmatprep.subr.mxu0 %v75
    %144 = vmatpush1.msra.mxu0 %v74
    %145 = vmatprep.subr.mxu0 %v78
    %146 = vmatpush1.msra.mxu0 %v77
    %147 = vmatprep.subr.mxu0 %v81
    %148 = vmatpush1.msra.mxu0 %v80
    %149 = vmatprep.subr.mxu0 %v84
    %150 = vmatpush1.msra.mxu0 %v83
    %151 = vmatprep.subr.mxu0 %v87
    %152 = vmatpush1.msra.mxu0 %v86
    %153 = vmatprep.subr.mxu0 %v90
    %154 = vmatpush1.msra.mxu0 %v89
    %155 = vmatprep.subr.mxu0 %v93
    %156 = vmatpush1.msra.mxu0 %v92
    %157 = vmatprep.subr.mxu0 %v96
    %158 = vmatpush1.msra.mxu0 %v95
    %159 = vmatprep.subr.mxu0 %v99
    %160 = vmatpush1.msra.mxu0 %v98
    %161 = vmatprep.subr.mxu0 %v102
    %162 = vmatpush1.msra.mxu0 %v101
    %163 = vmatprep.subr.mxu0 %v105
    %164 = vmatpush1.msra.mxu0 %v104
    %165 = vmatprep.subr.mxu0 %v108
    %166 = vmatpush1.msra.mxu0 %v107
    %167 = vmatprep.subr.mxu0 0.0
    %168 = vmatpush1.msra.mxu0 0.0
    %169 = vmatprep.subr.mxu0 0.0
    %170 = vmatpush1.msra.mxu0 0.0
    %171 = vmatprep.subr.mxu0 0.0
    %172 = vmatpush1.msra.mxu0 0.0
    %173 = vmatprep.subr.mxu0 0.0
    %174 = vmatpush1.msra.mxu0 0.0
    %175 = vmatprep.subr.mxu0 0.0
    %176 = vmatpush1.msra.mxu0 0.0
    %177 = vmatprep.subr.mxu0 0.0
    %178 = vmatpush1.msra.mxu0 0.0
    %179 = vmatprep.subr.mxu0 0.0
    %180 = vmatpush1.msra.mxu0 0.0
    %181 = vmatprep.subr.mxu0 0.0
    %182 = vmatpush1.msra.mxu0 0.0
    %183 = vmatprep.subr.mxu0 0.0
    %184 = vmatpush1.msra.mxu0 0.0
    %185 = vmatprep.subr.mxu0 0.0
    %186 = vmatpush1.msra.mxu0 0.0
    %187 = vmatprep.subr.mxu0 0.0
    %188 = vmatpush1.msra.mxu0 0.0
    %189 = vmatprep.subr.mxu0 0.0
    %190 = vmatpush1.msra.mxu0 0.0
    %191 = vmatprep.subr.mxu0 0.0
    %192 = vmatpush1.msra.mxu0 0.0
    %193 = vmatprep.subr.mxu0 0.0
    %194 = vmatpush1.msra.mxu0 0.0
    %195 = vmatprep.mubr.f32.mxu0 %v129
    %196 = vmatmul.mubr.f32.gmra.mrb[0].mxu0 %v54
    %v197 = vpop.f32.mrb[0].mxu0
    %v198 = vadd.f32 %v115, %v197
    %v199 = vpop.f32.mrb[0].mxu0
    %v200 = vadd.f32 %v119, %v199
    %201 = vdwg.mxu0
    %202 = vmatprep.subr.mxu0 0.0
    %203 = vmatpush1.msra.mxu0 %v58
    %204 = vmatprep.subr.mxu0 0.0
    %205 = vmatpush1.msra.mxu0 %v61
    %206 = vmatprep.subr.mxu0 0.0
    %207 = vmatpush1.msra.mxu0 %v64
    %208 = vmatprep.subr.mxu0 0.0
    %209 = vmatpush1.msra.mxu0 %v67
    %210 = vmatprep.subr.mxu0 0.0
    %211 = vmatpush1.msra.mxu0 %v70
    %212 = vmatprep.subr.mxu0 0.0
    %213 = vmatpush1.msra.mxu0 %v73
    %214 = vmatprep.subr.mxu0 0.0
    %215 = vmatpush1.msra.mxu0 %v76
    %216 = vmatprep.subr.mxu0 0.0
    %217 = vmatpush1.msra.mxu0 %v79
    %218 = vmatprep.subr.mxu0 0.0
    %219 = vmatpush1.msra.mxu0 %v82
    %220 = vmatprep.subr.mxu0 0.0
    %221 = vmatpush1.msra.mxu0 %v85
    %222 = vmatprep.subr.mxu0 0.0
    %223 = vmatpush1.msra.mxu0 %v88
    %224 = vmatprep.subr.mxu0 0.0
    %225 = vmatpush1.msra.mxu0 %v91
    %226 = vmatprep.subr.mxu0 0.0
    %227 = vmatpush1.msra.mxu0 %v94
    %228 = vmatprep.subr.mxu0 0.0
    %229 = vmatpush1.msra.mxu0 %v97
    %230 = vmatprep.subr.mxu0 0.0
    %231 = vmatpush1.msra.mxu0 %v100
    %232 = vmatprep.subr.mxu0 0.0
    %233 = vmatpush1.msra.mxu0 %v103
    %234 = vmatprep.subr.mxu0 0.0
    %235 = vmatpush1.msra.mxu0 %v106
    %236 = vmatprep.subr.mxu0 0.0
    %237 = vmatpush1.msra.mxu0 %v109
    %238 = vmatprep.subr.mxu0 0.0
    %239 = vmatpush1.msra.mxu0 0.0
    %240 = vmatprep.subr.mxu0 0.0
    %241 = vmatpush1.msra.mxu0 0.0
    %242 = vmatprep.subr.mxu0 0.0
    %243 = vmatpush1.msra.mxu0 0.0
    %244 = vmatprep.subr.mxu0 0.0
    %245 = vmatpush1.msra.mxu0 0.0
    %246 = vmatprep.subr.mxu0 0.0
    %247 = vmatpush1.msra.mxu0 0.0
    %248 = vmatprep.subr.mxu0 0.0
    %249 = vmatpush1.msra.mxu0 0.0
    %250 = vmatprep.subr.mxu0 0.0
    %251 = vmatpush1.msra.mxu0 0.0
    %252 = vmatprep.subr.mxu0 0.0
    %253 = vmatpush1.msra.mxu0 0.0
    %254 = vmatprep.subr.mxu0 0.0
    %255 = vmatpush1.msra.mxu0 0.0
    %256 = vmatprep.subr.mxu0 0.0
    %257 = vmatpush1.msra.mxu0 0.0
    %258 = vmatprep.subr.mxu0 0.0
    %259 = vmatpush1.msra.mxu0 0.0
    %260 = vmatprep.subr.mxu0 0.0
    %261 = vmatpush1.msra.mxu0 0.0
    %262 = vmatprep.subr.mxu0 0.0
    %263 = vmatpush1.msra.mxu0 0.0
    %264 = vmatprep.subr.mxu0 0.0
    %265 = vmatpush1.msra.mxu0 0.0
    %266 = vmatprep.mubr.f32.mxu0 %v129
    %267 = vmatmul.mubr.f32.gmra.mrb[0].mxu0 %v54
    %v268 = vpop.f32.mrb[0].mxu0
    %v269 = vadd.f32 %v123, %v268
    %v270 = vpop.f32.mrb[0].mxu0
    %271 = vdwg.mxu0
    %v272 = vmax.f32 %v198, 0.0
    %v273 = vmax.f32 %v200, 0.0
    %v274 = vmax.f32 %v269, 0.0
    %275 = vst [vmem:[#allocation2] sm:$0xff] %v273
    %276 = vst [vmem:[#allocation2 + $0x8] sm:$0xff] %v274
    %v277 = vld [vmem:[#allocation2] sm:$0xff]
    %v278 = vld [vmem:[#allocation2 + $0x8] sm:$0xff]
    %v279 = vld [vmem:[#allocation5] sm:$0xff]
    %v280 = vld [vmem:[#allocation5 + $0x8] sm:$0xff]
    %v281 = vld [vmem:[#allocation5 + $0x10] sm:$0xff]
    %v282 = vld [vmem:[#allocation5 + $0x18] sm:$0xff]
    %v283 = vld [vmem:[#allocation5 + $0x20] sm:$0xff]
    %v284 = vld [vmem:[#allocation5 + $0x28] sm:$0xff]
    %v285 = vld [vmem:[#allocation5 + $0x30] sm:$0xff]
    %v286 = vld [vmem:[#allocation5 + $0x38] sm:$0xff]
    %v287 = vld [vmem:[#allocation5 + $0x40] sm:$0xff]
    %v288 = vld [vmem:[#allocation5 + $0x48] sm:$0xff]
    %v289 = vld [vmem:[#allocation5 + $0x50] sm:$0xff]
    %v290 = vld [vmem:[#allocation5 + $0x58] sm:$0xff]
    %v291 = vld [vmem:[#allocation5 + $0x60] sm:$0xff]
    %v292 = vld [vmem:[#allocation5 + $0x68] sm:$0xff]
    %v293 = vld [vmem:[#allocation5 + $0x70] sm:$0xff]
    %v294 = vld [vmem:[#allocation5 + $0x78] sm:$0xff]
    %v295 = vld [vmem:[%s4] sm:$0x1]
    %v297 = vlaneseq
    %v298 = vshrl.u32 %v297, 7
    %v299 = vsub.s32 0, %v298
    %v300 = vrot.slane %v295, %v299
    %302 = vmatprep.subr.mxu0 0.0
    %303 = vmatpush1.msra.mxu0 %v279
    %304 = vmatprep.subr.mxu0 0.0
    %305 = vmatpush1.msra.mxu0 %v280
    %306 = vmatprep.subr.mxu0 0.0
    %307 = vmatpush1.msra.mxu0 %v281
    %308 = vmatprep.subr.mxu0 0.0
    %309 = vmatpush1.msra.mxu0 %v282
    %310 = vmatprep.subr.mxu0 0.0
    %311 = vmatpush1.msra.mxu0 %v283
    %312 = vmatprep.subr.mxu0 0.0
    %313 = vmatpush1.msra.mxu0 %v284
    %314 = vmatprep.subr.mxu0 0.0
    %315 = vmatpush1.msra.mxu0 %v285
    %316 = vmatprep.subr.mxu0 0.0
    %317 = vmatpush1.msra.mxu0 %v286
    %318 = vmatprep.subr.mxu0 0.0
    %319 = vmatpush1.msra.mxu0 %v287
    %320 = vmatprep.subr.mxu0 0.0
    %321 = vmatpush1.msra.mxu0 %v288
    %322 = vmatprep.subr.mxu0 0.0
    %323 = vmatpush1.msra.mxu0 %v289
    %324 = vmatprep.subr.mxu0 0.0
    %325 = vmatpush1.msra.mxu0 %v290
    %326 = vmatprep.subr.mxu0 0.0
    %327 = vmatpush1.msra.mxu0 %v291
    %328 = vmatprep.subr.mxu0 0.0
    %329 = vmatpush1.msra.mxu0 %v292
    %330 = vmatprep.subr.mxu0 0.0
    %331 = vmatpush1.msra.mxu0 %v293
    %332 = vmatprep.subr.mxu0 0.0
    %333 = vmatpush1.msra.mxu0 %v294
    %334 = vmatprep.subr.mxu0 0.0
    %335 = vmatpush1.msra.mxu0 0.0
    %336 = vmatprep.subr.mxu0 0.0
    %337 = vmatpush1.msra.mxu0 0.0
    %338 = vmatprep.subr.mxu0 0.0
    %339 = vmatpush1.msra.mxu0 0.0
    %340 = vmatprep.subr.mxu0 0.0
    %341 = vmatpush1.msra.mxu0 0.0
    %342 = vmatprep.subr.mxu0 0.0
    %343 = vmatpush1.msra.mxu0 0.0
    %344 = vmatprep.subr.mxu0 0.0
    %345 = vmatpush1.msra.mxu0 0.0
    %346 = vmatprep.subr.mxu0 0.0
    %347 = vmatpush1.msra.mxu0 0.0
    %348 = vmatprep.subr.mxu0 0.0
    %349 = vmatpush1.msra.mxu0 0.0
    %350 = vmatprep.subr.mxu0 0.0
    %351 = vmatpush1.msra.mxu0 0.0
    %352 = vmatprep.subr.mxu0 0.0
    %353 = vmatpush1.msra.mxu0 0.0
    %354 = vmatprep.subr.mxu0 0.0
    %355 = vmatpush1.msra.mxu0 0.0
    %356 = vmatprep.subr.mxu0 0.0
    %357 = vmatpush1.msra.mxu0 0.0
    %358 = vmatprep.subr.mxu0 0.0
    %359 = vmatpush1.msra.mxu0 0.0
    %360 = vmatprep.subr.mxu0 0.0
    %361 = vmatpush1.msra.mxu0 0.0
    %362 = vmatprep.subr.mxu0 0.0
    %363 = vmatpush1.msra.mxu0 0.0
    %364 = vmatprep.subr.mxu0 0.0
    %365 = vmatpush1.msra.mxu0 0.0
    %366 = vmatprep.mubr.f32.mxu0 0.0
    %367 = vmatmul.mubr.f32.gmra.mrb[0].mxu0 %v272
    %v368 = vpop.f32.mrb[0].mxu0
    %v369 = vadd.f32 %v300, %v368
    %v370 = vpop.f32.mrb[0].mxu0
    %371 = vdwg.mxu0
    %v372 = vmax.f32 %v369, 0.0
    %s373 = scalar_lea.vmem [#allocation5], 128
    %v374 = vld [vmem:[%s373] sm:$0xff]
    %v375 = vld [vmem:[%s373 + $0x8] sm:$0xff]
    %v376 = vld [vmem:[%s373 + $0x10] sm:$0xff]
    %v377 = vld [vmem:[%s373 + $0x18] sm:$0xff]
    %v378 = vld [vmem:[%s373 + $0x20] sm:$0xff]
    %v379 = vld [vmem:[%s373 + $0x28] sm:$0xff]
    %v380 = vld [vmem:[%s373 + $0x30] sm:$0xff]
    %v381 = vld [vmem:[%s373 + $0x38] sm:$0xff]
    %v382 = vld [vmem:[%s373 + $0x40] sm:$0xff]
    %v383 = vld [vmem:[%s373 + $0x48] sm:$0xff]
    %v384 = vld [vmem:[%s373 + $0x50] sm:$0xff]
    %v385 = vld [vmem:[%s373 + $0x58] sm:$0xff]
    %v386 = vld [vmem:[%s373 + $0x60] sm:$0xff]
    %v387 = vld [vmem:[%s373 + $0x68] sm:$0xff]
    %v388 = vld [vmem:[%s373 + $0x70] sm:$0xff]
    %v389 = vld [vmem:[%s373 + $0x78] sm:$0xff]
    %s390 = scalar_lea.vmem %s4, 1
    %v391 = vld [vmem:[%s390] sm:$0x1]
    %v393 = vlaneseq
    %v394 = vshrl.u32 %v393, 7
    %v395 = vsub.s32 0, %v394
    %v396 = vrot.slane %v391, %v395
    %398 = vmatprep.subr.mxu0 0.0
    %399 = vmatpush1.msra.mxu0 %v374
    %400 = vmatprep.subr.mxu0 0.0
    %401 = vmatpush1.msra.mxu0 %v375
    %402 = vmatprep.subr.mxu0 0.0
    %403 = vmatpush1.msra.mxu0 %v376
    %404 = vmatprep.subr.mxu0 0.0
    %405 = vmatpush1.msra.mxu0 %v377
    %406 = vmatprep.subr.mxu0 0.0
    %407 = vmatpush1.msra.mxu0 %v378
    %408 = vmatprep.subr.mxu0 0.0
    %409 = vmatpush1.msra.mxu0 %v379
    %410 = vmatprep.subr.mxu0 0.0
    %411 = vmatpush1.msra.mxu0 %v380
    %412 = vmatprep.subr.mxu0 0.0
    %413 = vmatpush1.msra.mxu0 %v381
    %414 = vmatprep.subr.mxu0 0.0
    %415 = vmatpush1.msra.mxu0 %v382
    %416 = vmatprep.subr.mxu0 0.0
    %417 = vmatpush1.msra.mxu0 %v383
    %418 = vmatprep.subr.mxu0 0.0
    %419 = vmatpush1.msra.mxu0 %v384
    %420 = vmatprep.subr.mxu0 0.0
    %421 = vmatpush1.msra.mxu0 %v385
    %422 = vmatprep.subr.mxu0 0.0
    %423 = vmatpush1.msra.mxu0 %v386
    %424 = vmatprep.subr.mxu0 0.0
    %425 = vmatpush1.msra.mxu0 %v387
    %426 = vmatprep.subr.mxu0 0.0
    %427 = vmatpush1.msra.mxu0 %v388
    %428 = vmatprep.subr.mxu0 0.0
    %429 = vmatpush1.msra.mxu0 %v389
    %430 = vmatprep.subr.mxu0 0.0
    %431 = vmatpush1.msra.mxu0 0.0
    %432 = vmatprep.subr.mxu0 0.0
    %433 = vmatpush1.msra.mxu0 0.0
    %434 = vmatprep.subr.mxu0 0.0
    %435 = vmatpush1.msra.mxu0 0.0
    %436 = vmatprep.subr.mxu0 0.0
    %437 = vmatpush1.msra.mxu0 0.0
    %438 = vmatprep.subr.mxu0 0.0
    %439 = vmatpush1.msra.mxu0 0.0
    %440 = vmatprep.subr.mxu0 0.0
    %441 = vmatpush1.msra.mxu0 0.0
    %442 = vmatprep.subr.mxu0 0.0
    %443 = vmatpush1.msra.mxu0 0.0
    %444 = vmatprep.subr.mxu0 0.0
    %445 = vmatpush1.msra.mxu0 0.0
    %446 = vmatprep.subr.mxu0 0.0
    %447 = vmatpush1.msra.mxu0 0.0
    %448 = vmatprep.subr.mxu0 0.0
    %449 = vmatpush1.msra.mxu0 0.0
    %450 = vmatprep.subr.mxu0 0.0
    %451 = vmatpush1.msra.mxu0 0.0
    %452 = vmatprep.subr.mxu0 0.0
    %453 = vmatpush1.msra.mxu0 0.0
    %454 = vmatprep.subr.mxu0 0.0
    %455 = vmatpush1.msra.mxu0 0.0
    %456 = vmatprep.subr.mxu0 0.0
    %457 = vmatpush1.msra.mxu0 0.0
    %458 = vmatprep.subr.mxu0 0.0
    %459 = vmatpush1.msra.mxu0 0.0
    %460 = vmatprep.subr.mxu0 0.0
    %461 = vmatpush1.msra.mxu0 0.0
    %462 = vmatprep.mubr.f32.mxu0 0.0
    %463 = vmatmul.mubr.f32.gmra.mrb[0].mxu0 %v372
    %v464 = vpop.f32.mrb[0].mxu0
    %v465 = vadd.f32 %v396, %v464
    %v466 = vpop.f32.mrb[0].mxu0
    %467 = vdwg.mxu0
    %v468 = vmax.f32 %v465, 0.0
    %s469 = scalar_lea.vmem [#allocation5], 256
    %v470 = vld [vmem:[%s469] sm:$0xff]
    %v471 = vld [vmem:[%s469 + $0x8] sm:$0xff]
    %v472 = vld [vmem:[%s469 + $0x10] sm:$0xff]
    %v473 = vld [vmem:[%s469 + $0x18] sm:$0xff]
    %v474 = vld [vmem:[%s469 + $0x20] sm:$0xff]
    %v475 = vld [vmem:[%s469 + $0x28] sm:$0xff]
    %v476 = vld [vmem:[%s469 + $0x30] sm:$0xff]
    %v477 = vld [vmem:[%s469 + $0x38] sm:$0xff]
    %v478 = vld [vmem:[%s469 + $0x40] sm:$0xff]
    %v479 = vld [vmem:[%s469 + $0x48] sm:$0xff]
    %v480 = vld [vmem:[%s469 + $0x50] sm:$0xff]
    %v481 = vld [vmem:[%s469 + $0x58] sm:$0xff]
    %v482 = vld [vmem:[%s469 + $0x60] sm:$0xff]
    %v483 = vld [vmem:[%s469 + $0x68] sm:$0xff]
    %v484 = vld [vmem:[%s469 + $0x70] sm:$0xff]
    %v485 = vld [vmem:[%s469 + $0x78] sm:$0xff]
    %s486 = scalar_lea.vmem %s4, 2
    %v487 = vld [vmem:[%s486] sm:$0x1]
    %v489 = vlaneseq
    %v490 = vshrl.u32 %v489, 7
    %v491 = vsub.s32 0, %v490
    %v492 = vrot.slane %v487, %v491
    %494 = vmatprep.subr.mxu0 0.0
    %495 = vmatpush1.msra.mxu0 %v470
    %496 = vmatprep.subr.mxu0 0.0
    %497 = vmatpush1.msra.mxu0 %v471
    %498 = vmatprep.subr.mxu0 0.0
    %499 = vmatpush1.msra.mxu0 %v472
    %500 = vmatprep.subr.mxu0 0.0
    %501 = vmatpush1.msra.mxu0 %v473
    %502 = vmatprep.subr.mxu0 0.0
    %503 = vmatpush1.msra.mxu0 %v474
    %504 = vmatprep.subr.mxu0 0.0
    %505 = vmatpush1.msra.mxu0 %v475
    %506 = vmatprep.subr.mxu0 0.0
    %507 = vmatpush1.msra.mxu0 %v476
    %508 = vmatprep.subr.mxu0 0.0
    %509 = vmatpush1.msra.mxu0 %v477
    %510 = vmatprep.subr.mxu0 0.0
    %511 = vmatpush1.msra.mxu0 %v478
    %512 = vmatprep.subr.mxu0 0.0
    %513 = vmatpush1.msra.mxu0 %v479
    %514 = vmatprep.subr.mxu0 0.0
    %515 = vmatpush1.msra.mxu0 %v480
    %516 = vmatprep.subr.mxu0 0.0
    %517 = vmatpush1.msra.mxu0 %v481
    %518 = vmatprep.subr.mxu0 0.0
    %519 = vmatpush1.msra.mxu0 %v482
    %520 = vmatprep.subr.mxu0 0.0
    %521 = vmatpush1.msra.mxu0 %v483
    %522 = vmatprep.subr.mxu0 0.0
    %523 = vmatpush1.msra.mxu0 %v484
    %524 = vmatprep.subr.mxu0 0.0
    %525 = vmatpush1.msra.mxu0 %v485
    %526 = vmatprep.subr.mxu0 0.0
    %527 = vmatpush1.msra.mxu0 0.0
    %528 = vmatprep.subr.mxu0 0.0
    %529 = vmatpush1.msra.mxu0 0.0
    %530 = vmatprep.subr.mxu0 0.0
    %531 = vmatpush1.msra.mxu0 0.0
    %532 = vmatprep.subr.mxu0 0.0
    %533 = vmatpush1.msra.mxu0 0.0
    %534 = vmatprep.subr.mxu0 0.0
    %535 = vmatpush1.msra.mxu0 0.0
    %536 = vmatprep.subr.mxu0 0.0
    %537 = vmatpush1.msra.mxu0 0.0
    %538 = vmatprep.subr.mxu0 0.0
    %539 = vmatpush1.msra.mxu0 0.0
    %540 = vmatprep.subr.mxu0 0.0
    %541 = vmatpush1.msra.mxu0 0.0
    %542 = vmatprep.subr.mxu0 0.0
    %543 = vmatpush1.msra.mxu0 0.0
    %544 = vmatprep.subr.mxu0 0.0
    %545 = vmatpush1.msra.mxu0 0.0
    %546 = vmatprep.subr.mxu0 0.0
    %547 = vmatpush1.msra.mxu0 0.0
    %548 = vmatprep.subr.mxu0 0.0
    %549 = vmatpush1.msra.mxu0 0.0
    %550 = vmatprep.subr.mxu0 0.0
    %551 = vmatpush1.msra.mxu0 0.0
    %552 = vmatprep.subr.mxu0 0.0
    %553 = vmatpush1.msra.mxu0 0.0
    %554 = vmatprep.subr.mxu0 0.0
    %555 = vmatpush1.msra.mxu0 0.0
    %556 = vmatprep.subr.mxu0 0.0
    %557 = vmatpush1.msra.mxu0 0.0
    %558 = vmatprep.mubr.f32.mxu0 0.0
    %559 = vmatmul.mubr.f32.gmra.mrb[0].mxu0 %v468
    %v560 = vpop.f32.mrb[0].mxu0
    %v561 = vadd.f32 %v492, %v560
    %v562 = vpop.f32.mrb[0].mxu0
    %563 = vdwg.mxu0
    %v564 = vmax.f32 %v561, 0.0
    %s565 = scalar_lea.vmem [#allocation5], 384
    %v566 = vld [vmem:[%s565] sm:$0xff]
    %v567 = vld [vmem:[%s565 + $0x8] sm:$0xff]
    %v568 = vld [vmem:[%s565 + $0x10] sm:$0xff]
    %v569 = vld [vmem:[%s565 + $0x18] sm:$0xff]
    %v570 = vld [vmem:[%s565 + $0x20] sm:$0xff]
    %v571 = vld [vmem:[%s565 + $0x28] sm:$0xff]
    %v572 = vld [vmem:[%s565 + $0x30] sm:$0xff]
    %v573 = vld [vmem:[%s565 + $0x38] sm:$0xff]
    %v574 = vld [vmem:[%s565 + $0x40] sm:$0xff]
    %v575 = vld [vmem:[%s565 + $0x48] sm:$0xff]
    %v576 = vld [vmem:[%s565 + $0x50] sm:$0xff]
    %v577 = vld [vmem:[%s565 + $0x58] sm:$0xff]
    %v578 = vld [vmem:[%s565 + $0x60] sm:$0xff]
    %v579 = vld [vmem:[%s565 + $0x68] sm:$0xff]
    %v580 = vld [vmem:[%s565 + $0x70] sm:$0xff]
    %v581 = vld [vmem:[%s565 + $0x78] sm:$0xff]
    %s582 = scalar_lea.vmem %s4, 3
    %v583 = vld [vmem:[%s582] sm:$0x1]
    %v585 = vlaneseq
    %v586 = vshrl.u32 %v585, 7
    %v587 = vsub.s32 0, %v586
    %v588 = vrot.slane %v583, %v587
    %590 = vmatprep.subr.mxu0 0.0
    %591 = vmatpush1.msra.mxu0 %v566
    %592 = vmatprep.subr.mxu0 0.0
    %593 = vmatpush1.msra.mxu0 %v567
    %594 = vmatprep.subr.mxu0 0.0
    %595 = vmatpush1.msra.mxu0 %v568
    %596 = vmatprep.subr.mxu0 0.0
    %597 = vmatpush1.msra.mxu0 %v569
    %598 = vmatprep.subr.mxu0 0.0
    %599 = vmatpush1.msra.mxu0 %v570
    %600 = vmatprep.subr.mxu0 0.0
    %601 = vmatpush1.msra.mxu0 %v571
    %602 = vmatprep.subr.mxu0 0.0
    %603 = vmatpush1.msra.mxu0 %v572
    %604 = vmatprep.subr.mxu0 0.0
    %605 = vmatpush1.msra.mxu0 %v573
    %606 = vmatprep.subr.mxu0 0.0
    %607 = vmatpush1.msra.mxu0 %v574
    %608 = vmatprep.subr.mxu0 0.0
    %609 = vmatpush1.msra.mxu0 %v575
    %610 = vmatprep.subr.mxu0 0.0
    %611 = vmatpush1.msra.mxu0 %v576
    %612 = vmatprep.subr.mxu0 0.0
    %613 = vmatpush1.msra.mxu0 %v577
    %614 = vmatprep.subr.mxu0 0.0
    %615 = vmatpush1.msra.mxu0 %v578
    %616 = vmatprep.subr.mxu0 0.0
    %617 = vmatpush1.msra.mxu0 %v579
    %618 = vmatprep.subr.mxu0 0.0
    %619 = vmatpush1.msra.mxu0 %v580
    %620 = vmatprep.subr.mxu0 0.0
    %621 = vmatpush1.msra.mxu0 %v581
    %622 = vmatprep.subr.mxu0 0.0
    %623 = vmatpush1.msra.mxu0 0.0
    %624 = vmatprep.subr.mxu0 0.0
    %625 = vmatpush1.msra.mxu0 0.0
    %626 = vmatprep.subr.mxu0 0.0
    %627 = vmatpush1.msra.mxu0 0.0
    %628 = vmatprep.subr.mxu0 0.0
    %629 = vmatpush1.msra.mxu0 0.0
    %630 = vmatprep.subr.mxu0 0.0
    %631 = vmatpush1.msra.mxu0 0.0
    %632 = vmatprep.subr.mxu0 0.0
    %633 = vmatpush1.msra.mxu0 0.0
    %634 = vmatprep.subr.mxu0 0.0
    %635 = vmatpush1.msra.mxu0 0.0
    %636 = vmatprep.subr.mxu0 0.0
    %637 = vmatpush1.msra.mxu0 0.0
    %638 = vmatprep.subr.mxu0 0.0
    %639 = vmatpush1.msra.mxu0 0.0
    %640 = vmatprep.subr.mxu0 0.0
    %641 = vmatpush1.msra.mxu0 0.0
    %642 = vmatprep.subr.mxu0 0.0
    %643 = vmatpush1.msra.mxu0 0.0
    %644 = vmatprep.subr.mxu0 0.0
    %645 = vmatpush1.msra.mxu0 0.0
    %646 = vmatprep.subr.mxu0 0.0
    %647 = vmatpush1.msra.mxu0 0.0
    %648 = vmatprep.subr.mxu0 0.0
    %649 = vmatpush1.msra.mxu0 0.0
    %650 = vmatprep.subr.mxu0 0.0
    %651 = vmatpush1.msra.mxu0 0.0
    %652 = vmatprep.subr.mxu0 0.0
    %653 = vmatpush1.msra.mxu0 0.0
    %654 = vmatprep.mubr.f32.mxu0 0.0
    %655 = vmatmul.mubr.f32.gmra.mrb[0].mxu0 %v564
    %v656 = vpop.f32.mrb[0].mxu0
    %v657 = vadd.f32 %v588, %v656
    %v658 = vpop.f32.mrb[0].mxu0
    %659 = vdwg.mxu0
    %v660 = vmax.f32 %v657, 0.0
    %s661 = scalar_lea.vmem [#allocation5], 512
    %v662 = vld [vmem:[%s661] sm:$0xff]
    %v663 = vld [vmem:[%s661 + $0x8] sm:$0xff]
    %v664 = vld [vmem:[%s661 + $0x10] sm:$0xff]
    %v665 = vld [vmem:[%s661 + $0x18] sm:$0xff]
    %v666 = vld [vmem:[%s661 + $0x20] sm:$0xff]
    %v667 = vld [vmem:[%s661 + $0x28] sm:$0xff]
    %v668 = vld [vmem:[%s661 + $0x30] sm:$0xff]
    %v669 = vld [vmem:[%s661 + $0x38] sm:$0xff]
    %v670 = vld [vmem:[%s661 + $0x40] sm:$0xff]
    %v671 = vld [vmem:[%s661 + $0x48] sm:$0xff]
    %v672 = vld [vmem:[%s661 + $0x50] sm:$0xff]
    %v673 = vld [vmem:[%s661 + $0x58] sm:$0xff]
    %v674 = vld [vmem:[%s661 + $0x60] sm:$0xff]
    %v675 = vld [vmem:[%s661 + $0x68] sm:$0xff]
    %v676 = vld [vmem:[%s661 + $0x70] sm:$0xff]
    %v677 = vld [vmem:[%s661 + $0x78] sm:$0xff]
    %s678 = scalar_lea.vmem %s4, 4
    %v679 = vld [vmem:[%s678] sm:$0x1]
    %v681 = vlaneseq
    %v682 = vshrl.u32 %v681, 7
    %v683 = vsub.s32 0, %v682
    %v684 = vrot.slane %v679, %v683
    %686 = vmatprep.subr.mxu0 0.0
    %687 = vmatpush1.msra.mxu0 %v662
    %688 = vmatprep.subr.mxu0 0.0
    %689 = vmatpush1.msra.mxu0 %v663
    %690 = vmatprep.subr.mxu0 0.0
    %691 = vmatpush1.msra.mxu0 %v664
    %692 = vmatprep.subr.mxu0 0.0
    %693 = vmatpush1.msra.mxu0 %v665
    %694 = vmatprep.subr.mxu0 0.0
    %695 = vmatpush1.msra.mxu0 %v666
    %696 = vmatprep.subr.mxu0 0.0
    %697 = vmatpush1.msra.mxu0 %v667
    %698 = vmatprep.subr.mxu0 0.0
    %699 = vmatpush1.msra.mxu0 %v668
    %700 = vmatprep.subr.mxu0 0.0
    %701 = vmatpush1.msra.mxu0 %v669
    %702 = vmatprep.subr.mxu0 0.0
    %703 = vmatpush1.msra.mxu0 %v670
    %704 = vmatprep.subr.mxu0 0.0
    %705 = vmatpush1.msra.mxu0 %v671
    %706 = vmatprep.subr.mxu0 0.0
    %707 = vmatpush1.msra.mxu0 %v672
    %708 = vmatprep.subr.mxu0 0.0
    %709 = vmatpush1.msra.mxu0 %v673
    %710 = vmatprep.subr.mxu0 0.0
    %711 = vmatpush1.msra.mxu0 %v674
    %712 = vmatprep.subr.mxu0 0.0
    %713 = vmatpush1.msra.mxu0 %v675
    %714 = vmatprep.subr.mxu0 0.0
    %715 = vmatpush1.msra.mxu0 %v676
    %716 = vmatprep.subr.mxu0 0.0
    %717 = vmatpush1.msra.mxu0 %v677
    %718 = vmatprep.subr.mxu0 0.0
    %719 = vmatpush1.msra.mxu0 0.0
    %720 = vmatprep.subr.mxu0 0.0
    %721 = vmatpush1.msra.mxu0 0.0
    %722 = vmatprep.subr.mxu0 0.0
    %723 = vmatpush1.msra.mxu0 0.0
    %724 = vmatprep.subr.mxu0 0.0
    %725 = vmatpush1.msra.mxu0 0.0
    %726 = vmatprep.subr.mxu0 0.0
    %727 = vmatpush1.msra.mxu0 0.0
    %728 = vmatprep.subr.mxu0 0.0
    %729 = vmatpush1.msra.mxu0 0.0
    %730 = vmatprep.subr.mxu0 0.0
    %731 = vmatpush1.msra.mxu0 0.0
    %732 = vmatprep.subr.mxu0 0.0
    %733 = vmatpush1.msra.mxu0 0.0
    %734 = vmatprep.subr.mxu0 0.0
    %735 = vmatpush1.msra.mxu0 0.0
    %736 = vmatprep.subr.mxu0 0.0
    %737 = vmatpush1.msra.mxu0 0.0
    %738 = vmatprep.subr.mxu0 0.0
    %739 = vmatpush1.msra.mxu0 0.0
    %740 = vmatprep.subr.mxu0 0.0
    %741 = vmatpush1.msra.mxu0 0.0
    %742 = vmatprep.subr.mxu0 0.0
    %743 = vmatpush1.msra.mxu0 0.0
    %744 = vmatprep.subr.mxu0 0.0
    %745 = vmatpush1.msra.mxu0 0.0
    %746 = vmatprep.subr.mxu0 0.0
    %747 = vmatpush1.msra.mxu0 0.0
    %748 = vmatprep.subr.mxu0 0.0
    %749 = vmatpush1.msra.mxu0 0.0
    %750 = vmatprep.mubr.f32.mxu0 0.0
    %751 = vmatmul.mubr.f32.gmra.mrb[0].mxu0 %v277
    %v752 = vpop.f32.mrb[0].mxu0
    %v753 = vadd.f32 %v684, %v752
    %v754 = vpop.f32.mrb[0].mxu0
    %755 = vmatprep.mubr.f32.mxu0 0.0
    %756 = vmatmul.mubr.f32.gmra.mrb[0].mxu0 %v278
    %v757 = vpop.f32.mrb[0].mxu0
    %v758 = vadd.f32 %v684, %v757
    %v759 = vpop.f32.mrb[0].mxu0
    %760 = vdwg.mxu0
    %v761 = vmax.f32 %v753, 0.0
    %v762 = vmax.f32 %v758, 0.0
    %s763 = scalar_lea.vmem [#allocation5], 640
    %v764 = vld [vmem:[%s763] sm:$0xff]
    %v765 = vld [vmem:[%s763 + $0x8] sm:$0xff]
    %v766 = vld [vmem:[%s763 + $0x10] sm:$0xff]
    %v767 = vld [vmem:[%s763 + $0x18] sm:$0xff]
    %v768 = vld [vmem:[%s763 + $0x20] sm:$0xff]
    %v769 = vld [vmem:[%s763 + $0x28] sm:$0xff]
    %v770 = vld [vmem:[%s763 + $0x30] sm:$0xff]
    %v771 = vld [vmem:[%s763 + $0x38] sm:$0xff]
    %v772 = vld [vmem:[%s763 + $0x40] sm:$0xff]
    %v773 = vld [vmem:[%s763 + $0x48] sm:$0xff]
    %v774 = vld [vmem:[%s763 + $0x50] sm:$0xff]
    %v775 = vld [vmem:[%s763 + $0x58] sm:$0xff]
    %v776 = vld [vmem:[%s763 + $0x60] sm:$0xff]
    %v777 = vld [vmem:[%s763 + $0x68] sm:$0xff]
    %v778 = vld [vmem:[%s763 + $0x70] sm:$0xff]
    %v779 = vld [vmem:[%s763 + $0x78] sm:$0xff]
    %s780 = scalar_lea.vmem %s4, 5
    %v781 = vld [vmem:[%s780] sm:$0x1]
    %v783 = vlaneseq
    %v784 = vshrl.u32 %v783, 7
    %v785 = vsub.s32 0, %v784
    %v786 = vrot.slane %v781, %v785
    %788 = vmatprep.subr.mxu0 0.0
    %789 = vmatpush1.msra.mxu0 %v764
    %790 = vmatprep.subr.mxu0 0.0
    %791 = vmatpush1.msra.mxu0 %v765
    %792 = vmatprep.subr.mxu0 0.0
    %793 = vmatpush1.msra.mxu0 %v766
    %794 = vmatprep.subr.mxu0 0.0
    %795 = vmatpush1.msra.mxu0 %v767
    %796 = vmatprep.subr.mxu0 0.0
    %797 = vmatpush1.msra.mxu0 %v768
    %798 = vmatprep.subr.mxu0 0.0
    %799 = vmatpush1.msra.mxu0 %v769
    %800 = vmatprep.subr.mxu0 0.0
    %801 = vmatpush1.msra.mxu0 %v770
    %802 = vmatprep.subr.mxu0 0.0
    %803 = vmatpush1.msra.mxu0 %v771
    %804 = vmatprep.subr.mxu0 0.0
    %805 = vmatpush1.msra.mxu0 %v772
    %806 = vmatprep.subr.mxu0 0.0
    %807 = vmatpush1.msra.mxu0 %v773
    %808 = vmatprep.subr.mxu0 0.0
    %809 = vmatpush1.msra.mxu0 %v774
    %810 = vmatprep.subr.mxu0 0.0
    %811 = vmatpush1.msra.mxu0 %v775
    %812 = vmatprep.subr.mxu0 0.0
    %813 = vmatpush1.msra.mxu0 %v776
    %814 = vmatprep.subr.mxu0 0.0
    %815 = vmatpush1.msra.mxu0 %v777
    %816 = vmatprep.subr.mxu0 0.0
    %817 = vmatpush1.msra.mxu0 %v778
    %818 = vmatprep.subr.mxu0 0.0
    %819 = vmatpush1.msra.mxu0 %v779
    %820 = vmatprep.subr.mxu0 0.0
    %821 = vmatpush1.msra.mxu0 0.0
    %822 = vmatprep.subr.mxu0 0.0
    %823 = vmatpush1.msra.mxu0 0.0
    %824 = vmatprep.subr.mxu0 0.0
    %825 = vmatpush1.msra.mxu0 0.0
    %826 = vmatprep.subr.mxu0 0.0
    %827 = vmatpush1.msra.mxu0 0.0
    %828 = vmatprep.subr.mxu0 0.0
    %829 = vmatpush1.msra.mxu0 0.0
    %830 = vmatprep.subr.mxu0 0.0
    %831 = vmatpush1.msra.mxu0 0.0
    %832 = vmatprep.subr.mxu0 0.0
    %833 = vmatpush1.msra.mxu0 0.0
    %834 = vmatprep.subr.mxu0 0.0
    %835 = vmatpush1.msra.mxu0 0.0
    %836 = vmatprep.subr.mxu0 0.0
    %837 = vmatpush1.msra.mxu0 0.0
    %838 = vmatprep.subr.mxu0 0.0
    %839 = vmatpush1.msra.mxu0 0.0
    %840 = vmatprep.subr.mxu0 0.0
    %841 = vmatpush1.msra.mxu0 0.0
    %842 = vmatprep.subr.mxu0 0.0
    %843 = vmatpush1.msra.mxu0 0.0
    %844 = vmatprep.subr.mxu0 0.0
    %845 = vmatpush1.msra.mxu0 0.0
    %846 = vmatprep.subr.mxu0 0.0
    %847 = vmatpush1.msra.mxu0 0.0
    %848 = vmatprep.subr.mxu0 0.0
    %849 = vmatpush1.msra.mxu0 0.0
    %850 = vmatprep.subr.mxu0 0.0
    %851 = vmatpush1.msra.mxu0 0.0
    %852 = vmatprep.mubr.f32.mxu0 0.0
    %853 = vmatmul.mubr.f32.gmra.mrb[0].mxu0 %v761
    %v854 = vpop.f32.mrb[0].mxu0
    %v855 = vadd.f32 %v786, %v854
    %v856 = vpop.f32.mrb[0].mxu0
    %857 = vmatprep.mubr.f32.mxu0 0.0
    %858 = vmatmul.mubr.f32.gmra.mrb[0].mxu0 %v762
    %v859 = vpop.f32.mrb[0].mxu0
    %v860 = vadd.f32 %v786, %v859
    %v861 = vpop.f32.mrb[0].mxu0
    %862 = vdwg.mxu0
    %v863 = vmax.f32 %v855, 0.0
    %v864 = vmax.f32 %v860, 0.0
    %s865 = scalar_lea.vmem [#allocation5], 768
    %v866 = vld [vmem:[%s865] sm:$0xff]
    %v867 = vld [vmem:[%s865 + $0x8] sm:$0xff]
    %v868 = vld [vmem:[%s865 + $0x10] sm:$0xff]
    %v869 = vld [vmem:[%s865 + $0x18] sm:$0xff]
    %v870 = vld [vmem:[%s865 + $0x20] sm:$0xff]
    %v871 = vld [vmem:[%s865 + $0x28] sm:$0xff]
    %v872 = vld [vmem:[%s865 + $0x30] sm:$0xff]
    %v873 = vld [vmem:[%s865 + $0x38] sm:$0xff]
    %v874 = vld [vmem:[%s865 + $0x40] sm:$0xff]
    %v875 = vld [vmem:[%s865 + $0x48] sm:$0xff]
    %v876 = vld [vmem:[%s865 + $0x50] sm:$0xff]
    %v877 = vld [vmem:[%s865 + $0x58] sm:$0xff]
    %v878 = vld [vmem:[%s865 + $0x60] sm:$0xff]
    %v879 = vld [vmem:[%s865 + $0x68] sm:$0xff]
    %v880 = vld [vmem:[%s865 + $0x70] sm:$0xff]
    %v881 = vld [vmem:[%s865 + $0x78] sm:$0xff]
    %s882 = scalar_lea.vmem %s4, 6
    %v883 = vld [vmem:[%s882] sm:$0x1]
    %v885 = vlaneseq
    %v886 = vshrl.u32 %v885, 7
    %v887 = vsub.s32 0, %v886
    %v888 = vrot.slane %v883, %v887
    %890 = vmatprep.subr.mxu0 0.0
    %891 = vmatpush1.msra.mxu0 %v866
    %892 = vmatprep.subr.mxu0 0.0
    %893 = vmatpush1.msra.mxu0 %v867
    %894 = vmatprep.subr.mxu0 0.0
    %895 = vmatpush1.msra.mxu0 %v868
    %896 = vmatprep.subr.mxu0 0.0
    %897 = vmatpush1.msra.mxu0 %v869
    %898 = vmatprep.subr.mxu0 0.0
    %899 = vmatpush1.msra.mxu0 %v870
    %900 = vmatprep.subr.mxu0 0.0
    %901 = vmatpush1.msra.mxu0 %v871
    %902 = vmatprep.subr.mxu0 0.0
    %903 = vmatpush1.msra.mxu0 %v872
    %904 = vmatprep.subr.mxu0 0.0
    %905 = vmatpush1.msra.mxu0 %v873
    %906 = vmatprep.subr.mxu0 0.0
    %907 = vmatpush1.msra.mxu0 %v874
    %908 = vmatprep.subr.mxu0 0.0
    %909 = vmatpush1.msra.mxu0 %v875
    %910 = vmatprep.subr.mxu0 0.0
    %911 = vmatpush1.msra.mxu0 %v876
    %912 = vmatprep.subr.mxu0 0.0
    %913 = vmatpush1.msra.mxu0 %v877
    %914 = vmatprep.subr.mxu0 0.0
    %915 = vmatpush1.msra.mxu0 %v878
    %916 = vmatprep.subr.mxu0 0.0
    %917 = vmatpush1.msra.mxu0 %v879
    %918 = vmatprep.subr.mxu0 0.0
    %919 = vmatpush1.msra.mxu0 %v880
    %920 = vmatprep.subr.mxu0 0.0
    %921 = vmatpush1.msra.mxu0 %v881
    %922 = vmatprep.subr.mxu0 0.0
    %923 = vmatpush1.msra.mxu0 0.0
    %924 = vmatprep.subr.mxu0 0.0
    %925 = vmatpush1.msra.mxu0 0.0
    %926 = vmatprep.subr.mxu0 0.0
    %927 = vmatpush1.msra.mxu0 0.0
    %928 = vmatprep.subr.mxu0 0.0
    %929 = vmatpush1.msra.mxu0 0.0
    %930 = vmatprep.subr.mxu0 0.0
    %931 = vmatpush1.msra.mxu0 0.0
    %932 = vmatprep.subr.mxu0 0.0
    %933 = vmatpush1.msra.mxu0 0.0
    %934 = vmatprep.subr.mxu0 0.0
    %935 = vmatpush1.msra.mxu0 0.0
    %936 = vmatprep.subr.mxu0 0.0
    %937 = vmatpush1.msra.mxu0 0.0
    %938 = vmatprep.subr.mxu0 0.0
    %939 = vmatpush1.msra.mxu0 0.0
    %940 = vmatprep.subr.mxu0 0.0
    %941 = vmatpush1.msra.mxu0 0.0
    %942 = vmatprep.subr.mxu0 0.0
    %943 = vmatpush1.msra.mxu0 0.0
    %944 = vmatprep.subr.mxu0 0.0
    %945 = vmatpush1.msra.mxu0 0.0
    %946 = vmatprep.subr.mxu0 0.0
    %947 = vmatpush1.msra.mxu0 0.0
    %948 = vmatprep.subr.mxu0 0.0
    %949 = vmatpush1.msra.mxu0 0.0
    %950 = vmatprep.subr.mxu0 0.0
    %951 = vmatpush1.msra.mxu0 0.0
    %952 = vmatprep.subr.mxu0 0.0
    %953 = vmatpush1.msra.mxu0 0.0
    %954 = vmatprep.mubr.f32.mxu0 0.0
    %955 = vmatmul.mubr.f32.gmra.mrb[0].mxu0 %v863
    %v956 = vpop.f32.mrb[0].mxu0
    %v957 = vadd.f32 %v888, %v956
    %v958 = vpop.f32.mrb[0].mxu0
    %959 = vmatprep.mubr.f32.mxu0 0.0
    %960 = vmatmul.mubr.f32.gmra.mrb[0].mxu0 %v864
    %v961 = vpop.f32.mrb[0].mxu0
    %v962 = vadd.f32 %v888, %v961
    %v963 = vpop.f32.mrb[0].mxu0
    %964 = vdwg.mxu0
    %v965 = vmax.f32 %v957, 0.0
    %v966 = vmax.f32 %v962, 0.0
    %s967 = scalar_lea.vmem [#allocation5], 896
    %v968 = vld [vmem:[%s967] sm:$0xff]
    %v969 = vld [vmem:[%s967 + $0x8] sm:$0xff]
    %v970 = vld [vmem:[%s967 + $0x10] sm:$0xff]
    %v971 = vld [vmem:[%s967 + $0x18] sm:$0xff]
    %v972 = vld [vmem:[%s967 + $0x20] sm:$0xff]
    %v973 = vld [vmem:[%s967 + $0x28] sm:$0xff]
    %v974 = vld [vmem:[%s967 + $0x30] sm:$0xff]
    %v975 = vld [vmem:[%s967 + $0x38] sm:$0xff]
    %v976 = vld [vmem:[%s967 + $0x40] sm:$0xff]
    %v977 = vld [vmem:[%s967 + $0x48] sm:$0xff]
    %v978 = vld [vmem:[%s967 + $0x50] sm:$0xff]
    %v979 = vld [vmem:[%s967 + $0x58] sm:$0xff]
    %v980 = vld [vmem:[%s967 + $0x60] sm:$0xff]
    %v981 = vld [vmem:[%s967 + $0x68] sm:$0xff]
    %v982 = vld [vmem:[%s967 + $0x70] sm:$0xff]
    %v983 = vld [vmem:[%s967 + $0x78] sm:$0xff]
    %s984 = scalar_lea.vmem %s4, 7
    %v985 = vld [vmem:[%s984] sm:$0x1]
    %v987 = vlaneseq
    %v988 = vshrl.u32 %v987, 7
    %v989 = vsub.s32 0, %v988
    %v990 = vrot.slane %v985, %v989
    %992 = vmatprep.subr.mxu0 0.0
    %993 = vmatpush1.msra.mxu0 %v968
    %994 = vmatprep.subr.mxu0 0.0
    %995 = vmatpush1.msra.mxu0 %v969
    %996 = vmatprep.subr.mxu0 0.0
    %997 = vmatpush1.msra.mxu0 %v970
    %998 = vmatprep.subr.mxu0 0.0
    %999 = vmatpush1.msra.mxu0 %v971
    %1000 = vmatprep.subr.mxu0 0.0
    %1001 = vmatpush1.msra.mxu0 %v972
    %1002 = vmatprep.subr.mxu0 0.0
    %1003 = vmatpush1.msra.mxu0 %v973
    %1004 = vmatprep.subr.mxu0 0.0
    %1005 = vmatpush1.msra.mxu0 %v974
    %1006 = vmatprep.subr.mxu0 0.0
    %1007 = vmatpush1.msra.mxu0 %v975
    %1008 = vmatprep.subr.mxu0 0.0
    %1009 = vmatpush1.msra.mxu0 %v976
    %1010 = vmatprep.subr.mxu0 0.0
    %1011 = vmatpush1.msra.mxu0 %v977
    %1012 = vmatprep.subr.mxu0 0.0
    %1013 = vmatpush1.msra.mxu0 %v978
    %1014 = vmatprep.subr.mxu0 0.0
    %1015 = vmatpush1.msra.mxu0 %v979
    %1016 = vmatprep.subr.mxu0 0.0
    %1017 = vmatpush1.msra.mxu0 %v980
    %1018 = vmatprep.subr.mxu0 0.0
    %1019 = vmatpush1.msra.mxu0 %v981
    %1020 = vmatprep.subr.mxu0 0.0
    %1021 = vmatpush1.msra.mxu0 %v982
    %1022 = vmatprep.subr.mxu0 0.0
    %1023 = vmatpush1.msra.mxu0 %v983
    %1024 = vmatprep.subr.mxu0 0.0
    %1025 = vmatpush1.msra.mxu0 0.0
    %1026 = vmatprep.subr.mxu0 0.0
    %1027 = vmatpush1.msra.mxu0 0.0
    %1028 = vmatprep.subr.mxu0 0.0
    %1029 = vmatpush1.msra.mxu0 0.0
    %1030 = vmatprep.subr.mxu0 0.0
    %1031 = vmatpush1.msra.mxu0 0.0
    %1032 = vmatprep.subr.mxu0 0.0
    %1033 = vmatpush1.msra.mxu0 0.0
    %1034 = vmatprep.subr.mxu0 0.0
    %1035 = vmatpush1.msra.mxu0 0.0
    %1036 = vmatprep.subr.mxu0 0.0
    %1037 = vmatpush1.msra.mxu0 0.0
    %1038 = vmatprep.subr.mxu0 0.0
    %1039 = vmatpush1.msra.mxu0 0.0
    %1040 = vmatprep.subr.mxu0 0.0
    %1041 = vmatpush1.msra.mxu0 0.0
    %1042 = vmatprep.subr.mxu0 0.0
    %1043 = vmatpush1.msra.mxu0 0.0
    %1044 = vmatprep.subr.mxu0 0.0
    %1045 = vmatpush1.msra.mxu0 0.0
    %1046 = vmatprep.subr.mxu0 0.0
    %1047 = vmatpush1.msra.mxu0 0.0
    %1048 = vmatprep.subr.mxu0 0.0
    %1049 = vmatpush1.msra.mxu0 0.0
    %1050 = vmatprep.subr.mxu0 0.0
    %1051 = vmatpush1.msra.mxu0 0.0
    %1052 = vmatprep.subr.mxu0 0.0
    %1053 = vmatpush1.msra.mxu0 0.0
    %1054 = vmatprep.subr.mxu0 0.0
    %1055 = vmatpush1.msra.mxu0 0.0
    %1056 = vmatprep.mubr.f32.mxu0 0.0
    %1057 = vmatmul.mubr.f32.gmra.mrb[0].mxu0 %v965
    %v1058 = vpop.f32.mrb[0].mxu0
    %v1059 = vadd.f32 %v990, %v1058
    %v1060 = vpop.f32.mrb[0].mxu0
    %1061 = vmatprep.mubr.f32.mxu0 0.0
    %1062 = vmatmul.mubr.f32.gmra.mrb[0].mxu0 %v966
    %v1063 = vpop.f32.mrb[0].mxu0
    %v1064 = vadd.f32 %v990, %v1063
    %v1065 = vpop.f32.mrb[0].mxu0
    %1066 = vdwg.mxu0
    %v1067 = vmax.f32 %v1059, 0.0
    %v1068 = vmax.f32 %v1064, 0.0
    %v1069 = vld [vmem:[%s6] sm:$0x1]
    %v1070 = vld [vmem:[%s5] sm:$0xff]
    %v1071 = vld [vmem:[%s5 + $0x8] sm:$0xff]
    %v1072 = vld [vmem:[%s5 + $0x10] sm:$0xff]
    %v1073 = vld [vmem:[%s5 + $0x18] sm:$0xff]
    %v1074 = vld [vmem:[%s5 + $0x20] sm:$0xff]
    %v1075 = vld [vmem:[%s5 + $0x28] sm:$0xff]
    %v1076 = vld [vmem:[%s5 + $0x30] sm:$0xff]
    %v1077 = vld [vmem:[%s5 + $0x38] sm:$0xff]
    %v1078 = vld [vmem:[%s5 + $0x40] sm:$0xff]
    %v1079 = vld [vmem:[%s5 + $0x48] sm:$0xff]
    %v1080 = vld [vmem:[%s5 + $0x50] sm:$0xff]
    %v1081 = vld [vmem:[%s5 + $0x58] sm:$0xff]
    %v1082 = vld [vmem:[%s5 + $0x60] sm:$0xff]
    %v1083 = vld [vmem:[%s5 + $0x68] sm:$0xff]
    %v1084 = vld [vmem:[%s5 + $0x70] sm:$0xff]
    %v1085 = vld [vmem:[%s5 + $0x78] sm:$0xff]
    %1086 = vmatprep.subr.mxu0 0.0
    %1087 = vmatpush1.msra.mxu0 %v1070
    %1088 = vmatprep.subr.mxu0 0.0
    %1089 = vmatpush1.msra.mxu0 %v1071
    %1090 = vmatprep.subr.mxu0 0.0
    %1091 = vmatpush1.msra.mxu0 %v1072
    %1092 = vmatprep.subr.mxu0 0.0
    %1093 = vmatpush1.msra.mxu0 %v1073
    %1094 = vmatprep.subr.mxu0 0.0
    %1095 = vmatpush1.msra.mxu0 %v1074
    %1096 = vmatprep.subr.mxu0 0.0
    %1097 = vmatpush1.msra.mxu0 %v1075
    %1098 = vmatprep.subr.mxu0 0.0
    %1099 = vmatpush1.msra.mxu0 %v1076
    %1100 = vmatprep.subr.mxu0 0.0
    %1101 = vmatpush1.msra.mxu0 %v1077
    %1102 = vmatprep.subr.mxu0 0.0
    %1103 = vmatpush1.msra.mxu0 %v1078
    %1104 = vmatprep.subr.mxu0 0.0
    %1105 = vmatpush1.msra.mxu0 %v1079
    %1106 = vmatprep.subr.mxu0 0.0
    %1107 = vmatpush1.msra.mxu0 %v1080
    %1108 = vmatprep.subr.mxu0 0.0
    %1109 = vmatpush1.msra.mxu0 %v1081
    %1110 = vmatprep.subr.mxu0 0.0
    %1111 = vmatpush1.msra.mxu0 %v1082
    %1112 = vmatprep.subr.mxu0 0.0
    %1113 = vmatpush1.msra.mxu0 %v1083
    %1114 = vmatprep.subr.mxu0 0.0
    %1115 = vmatpush1.msra.mxu0 %v1084
    %1116 = vmatprep.subr.mxu0 0.0
    %1117 = vmatpush1.msra.mxu0 %v1085
    %1118 = vmatprep.subr.mxu0 0.0
    %1119 = vmatpush1.msra.mxu0 0.0
    %1120 = vmatprep.subr.mxu0 0.0
    %1121 = vmatpush1.msra.mxu0 0.0
    %1122 = vmatprep.subr.mxu0 0.0
    %1123 = vmatpush1.msra.mxu0 0.0
    %1124 = vmatprep.subr.mxu0 0.0
    %1125 = vmatpush1.msra.mxu0 0.0
    %1126 = vmatprep.subr.mxu0 0.0
    %1127 = vmatpush1.msra.mxu0 0.0
    %1128 = vmatprep.subr.mxu0 0.0
    %1129 = vmatpush1.msra.mxu0 0.0
    %1130 = vmatprep.subr.mxu0 0.0
    %1131 = vmatpush1.msra.mxu0 0.0
    %1132 = vmatprep.subr.mxu0 0.0
    %1133 = vmatpush1.msra.mxu0 0.0
    %1134 = vmatprep.subr.mxu0 0.0
    %1135 = vmatpush1.msra.mxu0 0.0
    %1136 = vmatprep.subr.mxu0 0.0
    %1137 = vmatpush1.msra.mxu0 0.0
    %1138 = vmatprep.subr.mxu0 0.0
    %1139 = vmatpush1.msra.mxu0 0.0
    %1140 = vmatprep.subr.mxu0 0.0
    %1141 = vmatpush1.msra.mxu0 0.0
    %1142 = vmatprep.subr.mxu0 0.0
    %1143 = vmatpush1.msra.mxu0 0.0
    %1144 = vmatprep.subr.mxu0 0.0
    %1145 = vmatpush1.msra.mxu0 0.0
    %1146 = vmatprep.subr.mxu0 0.0
    %1147 = vmatpush1.msra.mxu0 0.0
    %1148 = vmatprep.subr.mxu0 0.0
    %1149 = vmatpush1.msra.mxu0 0.0
    %1150 = vmatprep.mubr.f32.mxu0 0.0
    %1151 = vmatmul.mubr.f32.gmra.mrb[0].mxu0 %v660
    %v1152 = vpop.f32.mrb[0].mxu0
    %v1153 = vadd.f32 0.0, %v1152
    %v1154 = vpop.f32.mrb[0].mxu0
    %1155 = vdwg.mxu0
    %1156 = vmatprep.subr.mxu0 0.0
    %1157 = vmatpush1.msra.mxu0 %v1070
    %1158 = vmatprep.subr.mxu0 0.0
    %1159 = vmatpush1.msra.mxu0 %v1071
    %1160 = vmatprep.subr.mxu0 0.0
    %1161 = vmatpush1.msra.mxu0 %v1072
    %1162 = vmatprep.subr.mxu0 0.0
    %1163 = vmatpush1.msra.mxu0 %v1073
    %1164 = vmatprep.subr.mxu0 0.0
    %1165 = vmatpush1.msra.mxu0 %v1074
    %1166 = vmatprep.subr.mxu0 0.0
    %1167 = vmatpush1.msra.mxu0 %v1075
    %1168 = vmatprep.subr.mxu0 0.0
    %1169 = vmatpush1.msra.mxu0 %v1076
    %1170 = vmatprep.subr.mxu0 0.0
    %1171 = vmatpush1.msra.mxu0 %v1077
    %1172 = vmatprep.subr.mxu0 0.0
    %1173 = vmatpush1.msra.mxu0 %v1078
    %1174 = vmatprep.subr.mxu0 0.0
    %1175 = vmatpush1.msra.mxu0 %v1079
    %1176 = vmatprep.subr.mxu0 0.0
    %1177 = vmatpush1.msra.mxu0 %v1080
    %1178 = vmatprep.subr.mxu0 0.0
    %1179 = vmatpush1.msra.mxu0 %v1081
    %1180 = vmatprep.subr.mxu0 0.0
    %1181 = vmatpush1.msra.mxu0 %v1082
    %1182 = vmatprep.subr.mxu0 0.0
    %1183 = vmatpush1.msra.mxu0 %v1083
    %1184 = vmatprep.subr.mxu0 0.0
    %1185 = vmatpush1.msra.mxu0 %v1084
    %1186 = vmatprep.subr.mxu0 0.0
    %1187 = vmatpush1.msra.mxu0 %v1085
    %1188 = vmatprep.subr.mxu0 0.0
    %1189 = vmatpush1.msra.mxu0 0.0
    %1190 = vmatprep.subr.mxu0 0.0
    %1191 = vmatpush1.msra.mxu0 0.0
    %1192 = vmatprep.subr.mxu0 0.0
    %1193 = vmatpush1.msra.mxu0 0.0
    %1194 = vmatprep.subr.mxu0 0.0
    %1195 = vmatpush1.msra.mxu0 0.0
    %1196 = vmatprep.subr.mxu0 0.0
    %1197 = vmatpush1.msra.mxu0 0.0
    %1198 = vmatprep.subr.mxu0 0.0
    %1199 = vmatpush1.msra.mxu0 0.0
    %1200 = vmatprep.subr.mxu0 0.0
    %1201 = vmatpush1.msra.mxu0 0.0
    %1202 = vmatprep.subr.mxu0 0.0
    %1203 = vmatpush1.msra.mxu0 0.0
    %1204 = vmatprep.subr.mxu0 0.0
    %1205 = vmatpush1.msra.mxu0 0.0
    %1206 = vmatprep.subr.mxu0 0.0
    %1207 = vmatpush1.msra.mxu0 0.0
    %1208 = vmatprep.subr.mxu0 0.0
    %1209 = vmatpush1.msra.mxu0 0.0
    %1210 = vmatprep.subr.mxu0 0.0
    %1211 = vmatpush1.msra.mxu0 0.0
    %1212 = vmatprep.subr.mxu0 0.0
    %1213 = vmatpush1.msra.mxu0 0.0
    %1214 = vmatprep.subr.mxu0 0.0
    %1215 = vmatpush1.msra.mxu0 0.0
    %1216 = vmatprep.subr.mxu0 0.0
    %1217 = vmatpush1.msra.mxu0 0.0
    %1218 = vmatprep.subr.mxu0 0.0
    %1219 = vmatpush1.msra.mxu0 0.0
    %1220 = vmatprep.mubr.f32.mxu0 0.0
    %1221 = vmatmul.mubr.f32.gmra.mrb[0].mxu0 %v1067
    %v1222 = vpop.f32.mrb[0].mxu0
    %v1223 = vadd.f32 0.0, %v1222
    %v1224 = vpop.f32.mrb[0].mxu0
    %1225 = vmatprep.mubr.f32.mxu0 0.0
    %1226 = vmatmul.mubr.f32.gmra.mrb[0].mxu0 %v1068
    %v1227 = vpop.f32.mrb[0].mxu0
    %v1228 = vadd.f32 0.0, %v1227
    %v1229 = vpop.f32.mrb[0].mxu0
    %1230 = vdwg.mxu0
    %v1232 = vlaneseq
    %v1233 = vshrl.u32 %v1232, 7
    %v1234 = vsub.s32 0, %v1233
    %v1235 = vrot.slane %v1069, %v1234
    %v1237 = vadd.f32 %v1153, %v1235
    %v1238 = vadd.f32 %v1223, %v1235
    %v1239 = vadd.f32 %v1228, %v1235
    %vm1240 = vcmask 15360
    %1241 = vst.msk [vmem:[%s7] sm:$0xff] %vm1240, %v1237
    %vm1242 = vcmask 31760
    %1243 = vst.msk [vmem:[%s7] sm:$0xff] %vm1242, 0.0
    %v1244 = vmax.f32 %v1238, %v1239
    %1246 = vrot.lane.b32.xlu0 %v1244, 2
    %v1247 = vpop.permute.xlu0 %1246
    %vm1249 = vcmask 39968
    %1250 = vst.msk [vmem:[%s7] sm:$0xff] %vm1249, %v1247
    // Predicated region
    $region38: #{switch_equivariant_agent.1} parent=1 // pred_check
      _
    $region39: #{switch_equivariant_agent.1} parent=1 // pred_check_branch
      %1252 = sbr.rel (0) target = $region41
    $region40: #{switch_equivariant_agent.1} parent=1 // pred_region
      _
    $region41: #{switch_equivariant_agent.1} parent=1 // pred_fallthru
      _
    // Predicated region
    $region42: #{switch_equivariant_agent.1} parent=1 // pred_check
      _
    $region43: #{switch_equivariant_agent.1} parent=1 // pred_check_branch
      %1254 = sbr.rel (0) target = $region45
    $region44: #{switch_equivariant_agent.1} parent=1 // pred_region
      _
    $region45: #{switch_equivariant_agent.1} parent=1 // pred_fallthru
      _
    %1255 = vsyncpa [#allocation4], 1
    %1256 = vsyncpa [#allocation6], 1

</llo_original>
